<compile_context>
chip_gen: v7x
topology: tpu7x:2x2x1
jax: 0.10.0
libtpu: 0.0.40
codegen_flags: <defaults>
</compile_context>

<pallas_src>
import math
from functools import partial

import jax
import jax.numpy as jnp
from jax import lax
from jax.experimental import pallas as pl
from jax.experimental.pallas import tpu as pltpu

_HIGHEST = lax.Precision.HIGHEST


def _round_up(v, m):
    return (v + m - 1) // m * m


def _pad_last(a, target):
    padw = target - a.shape[-1]
    if padw == 0:
        return a
    return jnp.pad(a, [(0, 0)] * (a.ndim - 1) + [(0, padw)])


# ------------------------------ kernels -------------------------------------

def _ln_matmul_kernel(x_ref, g_ref, b_ref, w_ref, bias_ref, o_ref, *, true_dim, eps):
    """out = (LayerNorm(x) * g + b) @ W + bias.

    The channel axis may be zero-padded; LN statistics divide by `true_dim`
    (padded columns are zero, so sums are unaffected, and g/b are zero there
    so padded columns of y stay zero before the matmul).
    """
    x = x_ref[...].astype(jnp.float32)                       # (tm, Kp)
    inv_n = 1.0 / true_dim
    s = jnp.sum(x, axis=-1, keepdims=True)
    ss = jnp.sum(x * x, axis=-1, keepdims=True)              # fused single pass
    mean = s * inv_n
    var = ss * inv_n - mean * mean
    inv = lax.rsqrt(var + eps)
    y = (x - mean) * inv * g_ref[...] + b_ref[...]
    out = jnp.dot(y, w_ref[...], preferred_element_type=jnp.float32,
                  precision=_HIGHEST)
    o_ref[...] = (out + bias_ref[...]).astype(o_ref.dtype)


def _matmul_bias_res_kernel(x_ref, w_ref, bias_ref, res_ref, o_ref):
    out = jnp.dot(x_ref[...].astype(jnp.float32), w_ref[...],
                  preferred_element_type=jnp.float32, precision=_HIGHEST)
    o_ref[...] = (out + bias_ref[...]
                  + res_ref[...].astype(jnp.float32)).astype(o_ref.dtype)


def _attn_kernel(qkv_ref, o_ref, *, num_heads, head_dim, dim, scale):
    """Per-batch multi-head softmax attention from a fused [q|k|v] projection."""
    qkv = qkv_ref[0].astype(jnp.float32)      # (N, Nqkv_padded)
    o_ref[...] = jnp.zeros_like(o_ref)        # zero the padded tail columns
    for h in range(num_heads):
        lo = h * head_dim
        q = qkv[:, lo:lo + head_dim]
        k = qkv[:, dim + lo:dim + lo + head_dim]
        v = qkv[:, 2 * dim + lo:2 * dim + lo + head_dim]
        s = lax.dot_general(q, k, (((1,), (1,)), ((), ())),
                            preferred_element_type=jnp.float32,
                            precision=_HIGHEST) * scale
        s = s - jnp.max(s, axis=-1, keepdims=True)
        p = jnp.exp(s)
        p = p / jnp.sum(p, axis=-1, keepdims=True)
        o = jnp.dot(p, v, preferred_element_type=jnp.float32, precision=_HIGHEST)
        o_ref[0, :, lo:lo + head_dim] = o.astype(o_ref.dtype)


def _dwconv_kernel(xp_ref, w_ref, b_ref, o_ref, *, H, W):
    """3x3 depthwise conv (stride 1, spatial zero-pad pre-applied) + bias."""
    w = w_ref[...].astype(jnp.float32)        # (9, Ch)
    acc = None
    for di in range(3):
        for dj in range(3):
            tap = xp_ref[0, di:di + H, dj:dj + W, :].astype(jnp.float32)
            term = tap * w[3 * di + dj]
            acc = term if acc is None else acc + term
    acc = acc + b_ref[0].astype(jnp.float32)
    o_ref[0] = acc.astype(o_ref.dtype)


# ------------------------------ wrappers ------------------------------------

def _choose_tm(M, max_tm):
    return min(max_tm, _round_up(M, 8))


def _ln_matmul(x2d, gamma, beta, w, bias, *, true_dim, eps, tm):
    M, K = x2d.shape
    N = w.shape[1]
    tm_eff = _choose_tm(M, tm)
    Mp = _round_up(M, tm_eff)
    xin = x2d if Mp == M else jnp.pad(x2d, ((0, Mp - M), (0, 0)))
    out = pl.pallas_call(
        partial(_ln_matmul_kernel, true_dim=true_dim, eps=eps),
        out_shape=jax.ShapeDtypeStruct((Mp, N), x2d.dtype),
        grid_spec=pltpu.PrefetchScalarGridSpec(
            num_scalar_prefetch=0,
            grid=(Mp // tm_eff,),
            in_specs=[
                pl.BlockSpec((tm_eff, K), lambda i: (i, 0)),
                pl.BlockSpec((1, K), lambda i: (0, 0)),
                pl.BlockSpec((1, K), lambda i: (0, 0)),
                pl.BlockSpec((K, N), lambda i: (0, 0)),
                pl.BlockSpec((1, N), lambda i: (0, 0)),
            ],
            out_specs=pl.BlockSpec((tm_eff, N), lambda i: (i, 0)),
        ),
        compiler_params=pltpu.CompilerParams(dimension_semantics=("parallel",)),
    )(xin, gamma.reshape(1, K), beta.reshape(1, K), w, bias.reshape(1, N))
    return out[:M] if Mp != M else out


def _matmul_bias_res(x2d, w, bias, res2d, *, tm):
    M, K = x2d.shape
    N = w.shape[1]
    tm_eff = _choose_tm(M, tm)
    Mp = _round_up(M, tm_eff)
    if Mp != M:
        x2d = jnp.pad(x2d, ((0, Mp - M), (0, 0)))
        res2d = jnp.pad(res2d, ((0, Mp - M), (0, 0)))
    out = pl.pallas_call(
        _matmul_bias_res_kernel,
        out_shape=jax.ShapeDtypeStruct((Mp, N), x2d.dtype),
        grid_spec=pltpu.PrefetchScalarGridSpec(
            num_scalar_prefetch=0,
            grid=(Mp // tm_eff,),
            in_specs=[
                pl.BlockSpec((tm_eff, K), lambda i: (i, 0)),
                pl.BlockSpec((K, N), lambda i: (0, 0)),
                pl.BlockSpec((1, N), lambda i: (0, 0)),
                pl.BlockSpec((tm_eff, N), lambda i: (i, 0)),
            ],
            out_specs=pl.BlockSpec((tm_eff, N), lambda i: (i, 0)),
        ),
        compiler_params=pltpu.CompilerParams(dimension_semantics=("parallel",)),
    )(x2d, w, bias.reshape(1, N), res2d)
    return out[:M] if Mp != M else out


def _attention(qkv3d, *, num_heads, head_dim, dim, out_cols):
    B, N, Kqkv = qkv3d.shape
    scale = head_dim ** -0.5
    return pl.pallas_call(
        partial(_attn_kernel, num_heads=num_heads, head_dim=head_dim,
                dim=dim, scale=scale),
        out_shape=jax.ShapeDtypeStruct((B, N, out_cols), qkv3d.dtype),
        grid_spec=pltpu.PrefetchScalarGridSpec(
            num_scalar_prefetch=0,
            grid=(B,),
            in_specs=[pl.BlockSpec((1, N, Kqkv), lambda b: (b, 0, 0))],
            out_specs=pl.BlockSpec((1, N, out_cols), lambda b: (b, 0, 0)),
        ),
        compiler_params=pltpu.CompilerParams(dimension_semantics=("parallel",)),
    )(qkv3d)


def _dwconv_bias(h3d, w9, dw_b, H, W):
    B, N, Ch = h3d.shape
    x4 = h3d.reshape(B, H, W, Ch)
    xp = jnp.pad(x4, ((0, 0), (1, 1), (1, 1), (0, 0)))
    out = pl.pallas_call(
        partial(_dwconv_kernel, H=H, W=W),
        out_shape=jax.ShapeDtypeStruct((B, H, W, Ch), h3d.dtype),
        grid_spec=pltpu.PrefetchScalarGridSpec(
            num_scalar_prefetch=0,
            grid=(B,),
            in_specs=[
                pl.BlockSpec((1, H + 2, W + 2, Ch), lambda b: (b, 0, 0, 0)),
                pl.BlockSpec((9, Ch), lambda b: (0, 0)),
                pl.BlockSpec((1, Ch), lambda b: (0, 0)),
            ],
            out_specs=pl.BlockSpec((1, H, W, Ch), lambda b: (b, 0, 0, 0)),
        ),
        compiler_params=pltpu.CompilerParams(dimension_semantics=("parallel",)),
    )(xp, w9, dw_b.reshape(1, Ch))
    return out.reshape(B, N, Ch)


# --------------------------- Block forward ----------------------------------

def block_forward(x, H, W, params, *, num_heads, sr_ratio=1, eps=1e-5, tm=256):
    """SegFormer Block forward.  x: (B, N=H*W, C).  Returns (B, N, C)."""
    if sr_ratio > 1:
        # TODO(synk): spatial-reduction path (Conv2d(k=sr, stride=sr) + LayerNorm
        # on the KV stream) is not implemented; default Block uses sr_ratio=1.
        raise NotImplementedError("sr_ratio > 1 path not implemented")

    B, N, C = x.shape
    M = B * N
    hd = C // num_heads
    Cp = _round_up(C, 128)                    # lane-dense channel width

    x2 = x.reshape(M, C)
    xp = _pad_last(x2, Cp)

    # --- LN1 + fused [q | k | v] projection (qkv_bias=False) ---
    Wq = params["q_w"].T                      # (C, C)   torch Linear: y = x @ W.T
    Wk = params["kv_w"][:C].T
    Wv = params["kv_w"][C:].T
    Wqkv = jnp.concatenate([Wq, Wk, Wv], axis=1)            # (C, 3C)
    Nqkv = _round_up(3 * C, 128)
    Wqkv = jnp.pad(Wqkv, ((0, Cp - C), (0, Nqkv - 3 * C)))
    bqkv = jnp.zeros((Nqkv,), x.dtype)
    g1 = _pad_last(params["norm1_w"], Cp)
    b1 = _pad_last(params["norm1_b"], Cp)
    qkv = _ln_matmul(xp, g1, b1, Wqkv, bqkv, true_dim=C, eps=eps, tm=tm)  # (M, Nqkv)

    # --- multi-head softmax attention (head-concat written lane-dense) ---
    attn_out = _attention(qkv.reshape(B, N, Nqkv), num_heads=num_heads,
                          head_dim=hd, dim=C, out_cols=Cp)  # (B, N, Cp)
    attn2 = attn_out.reshape(M, Cp)

    # --- proj + residual ---
    Wproj = jnp.pad(params["proj_w"].T, ((0, Cp - C), (0, Cp - C)))
    bproj = _pad_last(params["proj_b"], Cp)
    x1 = _matmul_bias_res(attn2, Wproj, bproj, xp, tm=tm)   # (M, Cp)

    # --- LN2 + fc1 ---
    hidden = params["fc1_w"].shape[0]
    Hp = _round_up(hidden, 128)
    Wfc1 = jnp.pad(params["fc1_w"].T, ((0, Cp - C), (0, Hp - hidden)))
    bfc1 = _pad_last(params["fc1_b"], Hp)
    g2 = _pad_last(params["norm2_w"], Cp)
    b2 = _pad_last(params["norm2_b"], Cp)
    h = _ln_matmul(x1, g2, b2, Wfc1, bfc1, true_dim=C, eps=eps, tm=tm)    # (M, Hp)

    # --- 3x3 depthwise conv + bias (Pallas) ---
    w9 = params["dw_w"][:, 0].reshape(hidden, 9).T          # (9, hidden)
    w9 = jnp.pad(w9, ((0, 0), (0, Hp - hidden)))
    dwb = _pad_last(params["dw_b"], Hp)
    dwo = _dwconv_bias(h.reshape(B, N, Hp), w9, dwb, H, W)  # (B, N, Hp)

    # TODO(synk): exact (erf) GELU is applied as XLA glue; fuse into the dwconv
    # kernel once erf lowering in Mosaic is confirmed on all target generations.
    g_act = jax.nn.gelu(dwo.reshape(M, Hp), approximate=False)

    # --- fc2 + residual ---
    Wfc2 = jnp.pad(params["fc2_w"].T, ((0, Hp - hidden), (0, Cp - C)))
    bfc2 = _pad_last(params["fc2_b"], Cp)
    x2o = _matmul_bias_res(g_act, Wfc2, bfc2, x1, tm=tm)    # (M, Cp)

    return x2o[:, :C].reshape(B, N, C)


# --------------------------- pure-JAX reference ------------------------------

def _reference_block(x, H, W, p, *, num_heads, eps=1e-5):
    B, N, C = x.shape
    hd = C // num_heads
    scale = hd ** -0.5

    def ln(z, g, b):
        m = z.mean(-1, keepdims=True)
        v = ((z - m) ** 2).mean(-1, keepdims=True)
        return (z - m) * lax.rsqrt(v + eps) * g + b

    y = ln(x, p["norm1_w"], p["norm1_b"])
    q = jnp.einsum("bnc,dc->bnd", y, p["q_w"], precision=_HIGHEST)
    kv = jnp.einsum("bnc,dc->bnd", y, p["kv_w"], precision=_HIGHEST)
    k, v = kv[..., :C], kv[..., C:]

    def heads(z):
        return z.reshape(B, N, num_heads, hd).transpose(0, 2, 1, 3)

    qh, kh, vh = heads(q), heads(k), heads(v)
    attn = jnp.einsum("bhqd,bhkd->bhqk", qh, kh, precision=_HIGHEST) * scale
    attn = jax.nn.softmax(attn, axis=-1)
    o = jnp.einsum("bhqk,bhkd->bhqd", attn, vh, precision=_HIGHEST)
    o = o.transpose(0, 2, 1, 3).reshape(B, N, C)
    o = jnp.einsum("bnc,dc->bnd", o, p["proj_w"], precision=_HIGHEST) + p["proj_b"]
    x1 = x + o

    y2 = ln(x1, p["norm2_w"], p["norm2_b"])
    h1 = jnp.einsum("bnc,dc->bnd", y2, p["fc1_w"], precision=_HIGHEST) + p["fc1_b"]
    Ch = h1.shape[-1]
    h_img = h1.transpose(0, 2, 1).reshape(B, Ch, H, W)
    dw = lax.conv_general_dilated(
        h_img, p["dw_w"], (1, 1), [(1, 1), (1, 1)],
        dimension_numbers=("NCHW", "OIHW", "NCHW"),
        feature_group_count=Ch, precision=_HIGHEST)
    dw = dw + p["dw_b"][None, :, None, None]
    h2 = dw.reshape(B, Ch, N).transpose(0, 2, 1)
    h2 = jax.nn.gelu(h2, approximate=False)
    out2 = jnp.einsum("bnh,ch->bnc", h2, p["fc2_w"], precision=_HIGHEST) + p["fc2_b"]
    return x1 + out2


# ------------------------------ demo / test ----------------------------------

if __name__ == "__main__":
    B, C, H, W = 2, 32, 8, 8
    num_heads = 2
    mlp_ratio = 4.0
    hidden = int(C * mlp_ratio)               # 128
    N = H * W                                 # 64 tokens

    key = jax.random.PRNGKey(0)
    keys = jax.random.split(key, 8)
    std = 0.02

    def trunc(k, shape):                      # ~ trunc_normal_(std=0.02)
        return std * jax.random.truncated_normal(k, -2.0, 2.0, shape, jnp.float32)

    x = jax.random.normal(keys[0], (B, N, C), jnp.float32)

    fan_out_dw = 3 * 3 * hidden // hidden     # groups = hidden -> 9
    params = dict(
        norm1_w=jnp.ones((C,), jnp.float32),
        norm1_b=jnp.zeros((C,), jnp.float32),
        q_w=trunc(keys[1], (C, C)),                       # qkv_bias=False
        kv_w=trunc(keys[2], (2 * C, C)),
        proj_w=trunc(keys[3], (C, C)),
        proj_b=jnp.zeros((C,), jnp.float32),
        norm2_w=jnp.ones((C,), jnp.float32),
        norm2_b=jnp.zeros((C,), jnp.float32),
        fc1_w=trunc(keys[4], (hidden, C)),
        fc1_b=jnp.zeros((hidden,), jnp.float32),
        dw_w=jax.random.normal(keys[5], (hidden, 1, 3, 3), jnp.float32)
        * math.sqrt(2.0 / fan_out_dw),
        dw_b=jnp.zeros((hidden,), jnp.float32),
        fc2_w=trunc(keys[6], (C, hidden)),
        fc2_b=jnp.zeros((C,), jnp.float32),
    )

    out = block_forward(x, H, W, params, num_heads=num_heads, sr_ratio=1)
    out = jax.block_until_ready(out)

    ref = _reference_block(x, H, W, params, num_heads=num_heads)

    assert out.shape == (B, N, C)
    assert jnp.allclose(out, ref, atol=5e-3, rtol=5e-3), \
        float(jnp.max(jnp.abs(out - ref)))

    print("KERNEL_OK")
</pallas_src>

<mosaic_0001>
module attributes {stable_mosaic.version = 11 : i64} {
  func.func @_ln_matmul_kernel(%arg0: i32, %arg1: memref<128x128xf32, #tpu.memory_space<vmem>>, %arg2: memref<1x128xf32, #tpu.memory_space<vmem>>, %arg3: memref<1x128xf32, #tpu.memory_space<vmem>>, %arg4: memref<128x128xf32, #tpu.memory_space<vmem>>, %arg5: memref<1x128xf32, #tpu.memory_space<vmem>>, %arg6: memref<128x128xf32, #tpu.memory_space<vmem>>) attributes {dimension_semantics = [#tpu.dimension_semantics<parallel>], iteration_bounds = array<i64: 1>, scalar_prefetch = 0 : i64, scratch_operands = 0 : i64, tpu.core_type = #tpu.core_type<tc>, window_params = [{transform_indices = @transform_0, window_bounds = array<i64: 128, 128>}, {pipeline_mode = #tpu.pipeline_mode<synchronous>, transform_indices = @transform_1, window_bounds = array<i64: 1, 128>}, {pipeline_mode = #tpu.pipeline_mode<synchronous>, transform_indices = @transform_2, window_bounds = array<i64: 1, 128>}, {pipeline_mode = #tpu.pipeline_mode<synchronous>, transform_indices = @transform_3, window_bounds = array<i64: 128, 128>}, {pipeline_mode = #tpu.pipeline_mode<synchronous>, transform_indices = @transform_4, window_bounds = array<i64: 1, 128>}, {transform_indices = @transform_5, window_bounds = array<i64: 128, 128>}]} {
    %c0 = arith.constant 0 : index
    %c0_0 = arith.constant 0 : index
    %0 = vector.load %arg1[%c0, %c0_0] : memref<128x128xf32, #tpu.memory_space<vmem>>, vector<128x128xf32>
    %cst = arith.constant dense<0.000000e+00> : vector<128xf32>
    %1 = vector.multi_reduction <add>, %0, %cst [1] : vector<128x128xf32> to vector<128xf32>
    %2 = vector.shape_cast %1 : vector<128xf32> to vector<128x1xf32>
    %3 = arith.mulf %0, %0 : vector<128x128xf32>
    %cst_1 = arith.constant dense<0.000000e+00> : vector<128xf32>
    %4 = vector.multi_reduction <add>, %3, %cst_1 [1] : vector<128x128xf32> to vector<128xf32>
    %5 = vector.shape_cast %4 : vector<128xf32> to vector<128x1xf32>
    %cst_2 = arith.constant 3.125000e-02 : f32
    %6 = vector.broadcast %cst_2 : f32 to vector<128x1xf32>
    %7 = arith.mulf %2, %6 : vector<128x1xf32>
    %cst_3 = arith.constant 3.125000e-02 : f32
    %8 = vector.broadcast %cst_3 : f32 to vector<128x1xf32>
    %9 = arith.mulf %5, %8 : vector<128x1xf32>
    %10 = arith.mulf %7, %7 : vector<128x1xf32>
    %11 = arith.subf %9, %10 : vector<128x1xf32>
    %cst_4 = arith.constant 9.99999974E-6 : f32
    %12 = vector.broadcast %cst_4 : f32 to vector<128x1xf32>
    %13 = arith.addf %11, %12 : vector<128x1xf32>
    %14 = math.rsqrt %13 : vector<128x1xf32>
    %15 = vector.broadcast %7 : vector<128x1xf32> to vector<128x128xf32>
    %16 = arith.subf %0, %15 : vector<128x128xf32>
    %17 = vector.broadcast %14 : vector<128x1xf32> to vector<128x128xf32>
    %18 = arith.mulf %16, %17 : vector<128x128xf32>
    %c0_5 = arith.constant 0 : index
    %c0_6 = arith.constant 0 : index
    %19 = vector.load %arg2[%c0_5, %c0_6] : memref<1x128xf32, #tpu.memory_space<vmem>>, vector<1x128xf32>
    %20 = vector.broadcast %19 : vector<1x128xf32> to vector<128x128xf32>
    %21 = arith.mulf %18, %20 : vector<128x128xf32>
    %c0_7 = arith.constant 0 : index
    %c0_8 = arith.constant 0 : index
    %22 = vector.load %arg3[%c0_7, %c0_8] : memref<1x128xf32, #tpu.memory_space<vmem>>, vector<1x128xf32>
    %23 = vector.broadcast %22 : vector<1x128xf32> to vector<128x128xf32>
    %24 = arith.addf %21, %23 : vector<128x128xf32>
    %c0_9 = arith.constant 0 : index
    %c0_10 = arith.constant 0 : index
    %25 = vector.load %arg4[%c0_9, %c0_10] : memref<128x128xf32, #tpu.memory_space<vmem>>, vector<128x128xf32>
    %cst_11 = arith.constant dense<0.000000e+00> : vector<128x128xf32>
    %26 = tpu.matmul %24, %25, %cst_11 {dimension_numbers = #tpu.dot_dimension_numbers<[1], [0], [0], [1], [0, 0, 1, 1], [], []>, precision = #tpu.contract_precision<fp32>} : vector<128x128xf32>, vector<128x128xf32>, vector<128x128xf32> -> vector<128x128xf32>
    %c0_12 = arith.constant 0 : index
    %c0_13 = arith.constant 0 : index
    %27 = vector.load %arg5[%c0_12, %c0_13] : memref<1x128xf32, #tpu.memory_space<vmem>>, vector<1x128xf32>
    %28 = vector.broadcast %27 : vector<1x128xf32> to vector<128x128xf32>
    %29 = arith.addf %26, %28 : vector<128x128xf32>
    %c0_14 = arith.constant 0 : index
    %c0_15 = arith.constant 0 : index
    %30 = vector.load %arg6[%c0_14, %c0_15] : memref<128x128xf32, #tpu.memory_space<vmem>>, vector<128x128xf32>
    tpu.vector_store %arg6[%c0_14, %c0_15], %29 {strides = array<i32>} : memref<128x128xf32, #tpu.memory_space<vmem>>, vector<128x128xf32>,
    return
  }
  func.func @transform_0(%arg0: i32) -> (i32, i32) {
    %c0_i32 = arith.constant 0 : i32
    %c0_i32_0 = arith.constant 0 : i32
    return %arg0, %c0_i32 : i32, i32
  }
  func.func @transform_1(%arg0: i32) -> (i32, i32) {
    %c0_i32 = arith.constant 0 : i32
    %c0_i32_0 = arith.constant 0 : i32
    %c0_i32_1 = arith.constant 0 : i32
    return %c0_i32, %c0_i32_0 : i32, i32
  }
  func.func @transform_2(%arg0: i32) -> (i32, i32) {
    %c0_i32 = arith.constant 0 : i32
    %c0_i32_0 = arith.constant 0 : i32
    %c0_i32_1 = arith.constant 0 : i32
    return %c0_i32, %c0_i32_0 : i32, i32
  }
  func.func @transform_3(%arg0: i32) -> (i32, i32) {
    %c0_i32 = arith.constant 0 : i32
    %c0_i32_0 = arith.constant 0 : i32
    %c0_i32_1 = arith.constant 0 : i32
    return %c0_i32, %c0_i32_0 : i32, i32
  }
  func.func @transform_4(%arg0: i32) -> (i32, i32) {
    %c0_i32 = arith.constant 0 : i32
    %c0_i32_0 = arith.constant 0 : i32
    %c0_i32_1 = arith.constant 0 : i32
    return %c0_i32, %c0_i32_0 : i32, i32
  }
  func.func @transform_5(%arg0: i32) -> (i32, i32) {
    %c0_i32 = arith.constant 0 : i32
    %c0_i32_0 = arith.constant 0 : i32
    return %arg0, %c0_i32 : i32, i32
  }
}

</mosaic_0001>

<llo_original>
// kernel: tpu_custom_call.1
$region0: #{tpu_custom_call.1}
  #allocation0 [shape = 'u32[]', space=smem, size = 0x4, offset = 0x4, fixed_abs, tag = 'smem constant byte address 0x4 - core index']
  #allocation1 [shape = 'u32[144,128]{1,0:T(1,128)}', space=vmem, size = 0x12000, scoped, tag = 'internal scratch']
  %s0 = inlined_call_operand.hbm [shape: f32[128,128], index: 0, kind: input, shape index: {}]
  %s1 = inlined_call_operand.vmem [shape: f32[1,128], index: 1, kind: input, shape index: {}]
  %s2 = inlined_call_operand.vmem [shape: f32[1,128], index: 2, kind: input, shape index: {}]
  %s3 = inlined_call_operand.hbm [shape: f32[128,128], index: 3, kind: input, shape index: {}]
  %s4 = inlined_call_operand.vmem [shape: f32[1,128], index: 4, kind: input, shape index: {}]
  %s5 = inlined_call_operand.hbm [shape: f32[128,128], index: 5, kind: output, shape index: {}]
  %s6 = sld [smem:[#allocation0]]
  $region38: #{tpu_custom_call.1} parent=0
    _
  %s8 = ssub.s32 1, %s6
  %s9 = scalar_select 0, %s8, %s6
  $region1: #{tpu_custom_call.1} parent=0
    #allocation2 [shape = 'u8[65536]{0}', space=vmem, size = 0x10000, scoped, tag = 'input window, operand 0, single buffered']
    #allocation3 [shape = 's32[1]{0}', space=sflag, size = 0x4, scoped, tag = 'scoped memory for tpu_custom_call.1']
    #allocation4 [shape = 's32[1]{0}', space=sflag, size = 0x4, scoped, tag = 'scoped memory for tpu_custom_call.1']
    #allocation5 [shape = 'u8[65536]{0}', space=vmem, size = 0x10000, scoped, tag = 'input window, operand 3, single buffered']
    #allocation6 [shape = 's32[1]{0}', space=sflag, size = 0x4, scoped, tag = 'scoped memory for tpu_custom_call.1']
    #allocation7 [shape = 'u8[65536]{0}', space=vmem, size = 0x10000, scoped, tag = 'output window, operand 0, single buffered']
    %10 = vsyncpa [#allocation3], 0
    %11 = vsyncpa [#allocation6], 0
    %12 = vsyncpa [#allocation4], 0
    // Predicated region
    $region2: #{tpu_custom_call.1} parent=1 // pred_check
      _
    $region3: #{tpu_custom_call.1} parent=1 // pred_check_branch
      %14 = sbr.rel (0) target = $region5
    $region4: #{tpu_custom_call.1} parent=1 // pred_region
      %s16 = ssub.s32 2048, 2048
      %17 = vsyncadd [#allocation3], %s16
      %s18 = sshll.u32 [#allocation2], 4
      %s19 = int_to_ptr.vmem [resolvable:$true] %s18
      %24 = dma.hbm_to_vmem [thread:$0]  %s0, 2048, %s19, [#allocation3], 128, 128, 8
    $region5: #{tpu_custom_call.1} parent=1 // pred_fallthru
      _
    // Predicated region
    $region6: #{tpu_custom_call.1} parent=1 // pred_check
      _
    $region7: #{tpu_custom_call.1} parent=1 // pred_check_branch
      %26 = sbr.rel (0) target = $region9
    $region8: #{tpu_custom_call.1} parent=1 // pred_region
      _
    $region9: #{tpu_custom_call.1} parent=1 // pred_fallthru
      _
    // Predicated region
    $region10: #{tpu_custom_call.1} parent=1 // pred_check
      _
    $region11: #{tpu_custom_call.1} parent=1 // pred_check_branch
      %28 = sbr.rel (0) target = $region13
    $region12: #{tpu_custom_call.1} parent=1 // pred_region
      _
    $region13: #{tpu_custom_call.1} parent=1 // pred_fallthru
      _
    // Predicated region
    $region14: #{tpu_custom_call.1} parent=1 // pred_check
      _
    $region15: #{tpu_custom_call.1} parent=1 // pred_check_branch
      %30 = sbr.rel (0) target = $region17
    $region16: #{tpu_custom_call.1} parent=1 // pred_region
      %s32 = ssub.s32 2048, 2048
      %33 = vsyncadd [#allocation6], %s32
      %s34 = sshll.u32 [#allocation5], 4
      %s35 = int_to_ptr.vmem [resolvable:$true] %s34
      %40 = dma.hbm_to_vmem [thread:$0]  %s3, 2048, %s35, [#allocation6], 128, 128, 8
    $region17: #{tpu_custom_call.1} parent=1 // pred_fallthru
      _
    // Predicated region
    $region18: #{tpu_custom_call.1} parent=1 // pred_check
      _
    $region19: #{tpu_custom_call.1} parent=1 // pred_check_branch
      %42 = sbr.rel (0) target = $region21
    $region20: #{tpu_custom_call.1} parent=1 // pred_region
      _
    $region21: #{tpu_custom_call.1} parent=1 // pred_fallthru
      _
    // Predicated region
    $region22: #{tpu_custom_call.1} parent=1 // pred_check
      _
    $region23: #{tpu_custom_call.1} parent=1 // pred_check_branch
      %44 = sbr.rel (0) target = $region25
    $region24: #{tpu_custom_call.1} parent=1 // pred_region
      %45 = dma.done [#allocation3], 2048
    $region25: #{tpu_custom_call.1} parent=1 // pred_fallthru
      _
    // Predicated region
    $region26: #{tpu_custom_call.1} parent=1 // pred_check
      _
    $region27: #{tpu_custom_call.1} parent=1 // pred_check_branch
      %47 = sbr.rel (0) target = $region29
    $region28: #{tpu_custom_call.1} parent=1 // pred_region
      %48 = dma.done [#allocation6], 2048
    $region29: #{tpu_custom_call.1} parent=1 // pred_fallthru
      _
    %v49 = vld [vmem:[#allocation2] sm:$0xff]
    %v50 = vld [vmem:[#allocation2 + $0x8] sm:$0xff]
    %v51 = vld [vmem:[#allocation2 + $0x10] sm:$0xff]
    %v52 = vld [vmem:[#allocation2 + $0x18] sm:$0xff]
    %v53 = vld [vmem:[#allocation2 + $0x20] sm:$0xff]
    %v54 = vld [vmem:[#allocation2 + $0x28] sm:$0xff]
    %v55 = vld [vmem:[#allocation2 + $0x30] sm:$0xff]
    %v56 = vld [vmem:[#allocation2 + $0x38] sm:$0xff]
    %v57 = vld [vmem:[#allocation2 + $0x40] sm:$0xff]
    %v58 = vld [vmem:[#allocation2 + $0x48] sm:$0xff]
    %v59 = vld [vmem:[#allocation2 + $0x50] sm:$0xff]
    %v60 = vld [vmem:[#allocation2 + $0x58] sm:$0xff]
    %v61 = vld [vmem:[#allocation2 + $0x60] sm:$0xff]
    %v62 = vld [vmem:[#allocation2 + $0x68] sm:$0xff]
    %v63 = vld [vmem:[#allocation2 + $0x70] sm:$0xff]
    %v64 = vld [vmem:[#allocation2 + $0x78] sm:$0xff]
    %65 = vadd.xlane.f32.xlu0 %v49
    %v66 = vpop.xlane.xlu0 %65
    %67 = vadd.xlane.f32.xlu0 %v50
    %v68 = vpop.xlane.xlu0 %67
    %69 = vadd.xlane.f32.xlu0 %v51
    %v70 = vpop.xlane.xlu0 %69
    %71 = vadd.xlane.f32.xlu0 %v52
    %v72 = vpop.xlane.xlu0 %71
    %73 = vadd.xlane.f32.xlu0 %v53
    %v74 = vpop.xlane.xlu0 %73
    %75 = vadd.xlane.f32.xlu0 %v54
    %v76 = vpop.xlane.xlu0 %75
    %77 = vadd.xlane.f32.xlu0 %v55
    %v78 = vpop.xlane.xlu0 %77
    %79 = vadd.xlane.f32.xlu0 %v56
    %v80 = vpop.xlane.xlu0 %79
    %81 = vadd.xlane.f32.xlu0 %v57
    %v82 = vpop.xlane.xlu0 %81
    %83 = vadd.xlane.f32.xlu0 %v58
    %v84 = vpop.xlane.xlu0 %83
    %85 = vadd.xlane.f32.xlu0 %v59
    %v86 = vpop.xlane.xlu0 %85
    %87 = vadd.xlane.f32.xlu0 %v60
    %v88 = vpop.xlane.xlu0 %87
    %89 = vadd.xlane.f32.xlu0 %v61
    %v90 = vpop.xlane.xlu0 %89
    %91 = vadd.xlane.f32.xlu0 %v62
    %v92 = vpop.xlane.xlu0 %91
    %93 = vadd.xlane.f32.xlu0 %v63
    %v94 = vpop.xlane.xlu0 %93
    %95 = vadd.xlane.f32.xlu0 %v64
    %v96 = vpop.xlane.xlu0 %95
    %v97 = vmul.f32 %v49, %v49
    %v98 = vmul.f32 %v50, %v50
    %v99 = vmul.f32 %v51, %v51
    %v100 = vmul.f32 %v52, %v52
    %v101 = vmul.f32 %v53, %v53
    %v102 = vmul.f32 %v54, %v54
    %v103 = vmul.f32 %v55, %v55
    %v104 = vmul.f32 %v56, %v56
    %v105 = vmul.f32 %v57, %v57
    %v106 = vmul.f32 %v58, %v58
    %v107 = vmul.f32 %v59, %v59
    %v108 = vmul.f32 %v60, %v60
    %v109 = vmul.f32 %v61, %v61
    %v110 = vmul.f32 %v62, %v62
    %v111 = vmul.f32 %v63, %v63
    %v112 = vmul.f32 %v64, %v64
    %113 = vadd.xlane.f32.xlu0 %v97
    %v114 = vpop.xlane.xlu0 %113
    %115 = vadd.xlane.f32.xlu0 %v98
    %v116 = vpop.xlane.xlu0 %115
    %117 = vadd.xlane.f32.xlu0 %v99
    %v118 = vpop.xlane.xlu0 %117
    %119 = vadd.xlane.f32.xlu0 %v100
    %v120 = vpop.xlane.xlu0 %119
    %121 = vadd.xlane.f32.xlu0 %v101
    %v122 = vpop.xlane.xlu0 %121
    %123 = vadd.xlane.f32.xlu0 %v102
    %v124 = vpop.xlane.xlu0 %123
    %125 = vadd.xlane.f32.xlu0 %v103
    %v126 = vpop.xlane.xlu0 %125
    %127 = vadd.xlane.f32.xlu0 %v104
    %v128 = vpop.xlane.xlu0 %127
    %129 = vadd.xlane.f32.xlu0 %v105
    %v130 = vpop.xlane.xlu0 %129
    %131 = vadd.xlane.f32.xlu0 %v106
    %v132 = vpop.xlane.xlu0 %131
    %133 = vadd.xlane.f32.xlu0 %v107
    %v134 = vpop.xlane.xlu0 %133
    %135 = vadd.xlane.f32.xlu0 %v108
    %v136 = vpop.xlane.xlu0 %135
    %137 = vadd.xlane.f32.xlu0 %v109
    %v138 = vpop.xlane.xlu0 %137
    %139 = vadd.xlane.f32.xlu0 %v110
    %v140 = vpop.xlane.xlu0 %139
    %141 = vadd.xlane.f32.xlu0 %v111
    %v142 = vpop.xlane.xlu0 %141
    %143 = vadd.xlane.f32.xlu0 %v112
    %v144 = vpop.xlane.xlu0 %143
    %v145 = vmul.f32 %v66, 0.03125
    %v146 = vmul.f32 %v68, 0.03125
    %v147 = vmul.f32 %v70, 0.03125
    %v148 = vmul.f32 %v72, 0.03125
    %v149 = vmul.f32 %v74, 0.03125
    %v150 = vmul.f32 %v76, 0.03125
    %v151 = vmul.f32 %v78, 0.03125
    %v152 = vmul.f32 %v80, 0.03125
    %v153 = vmul.f32 %v82, 0.03125
    %v154 = vmul.f32 %v84, 0.03125
    %v155 = vmul.f32 %v86, 0.03125
    %v156 = vmul.f32 %v88, 0.03125
    %v157 = vmul.f32 %v90, 0.03125
    %v158 = vmul.f32 %v92, 0.03125
    %v159 = vmul.f32 %v94, 0.03125
    %v160 = vmul.f32 %v96, 0.03125
    %v161 = vmul.f32 %v114, 0.03125
    %v162 = vmul.f32 %v116, 0.03125
    %v163 = vmul.f32 %v118, 0.03125
    %v164 = vmul.f32 %v120, 0.03125
    %v165 = vmul.f32 %v122, 0.03125
    %v166 = vmul.f32 %v124, 0.03125
    %v167 = vmul.f32 %v126, 0.03125
    %v168 = vmul.f32 %v128, 0.03125
    %v169 = vmul.f32 %v130, 0.03125
    %v170 = vmul.f32 %v132, 0.03125
    %v171 = vmul.f32 %v134, 0.03125
    %v172 = vmul.f32 %v136, 0.03125
    %v173 = vmul.f32 %v138, 0.03125
    %v174 = vmul.f32 %v140, 0.03125
    %v175 = vmul.f32 %v142, 0.03125
    %v176 = vmul.f32 %v144, 0.03125
    %v177 = vmul.f32 %v145, %v145
    %v178 = vmul.f32 %v146, %v146
    %v179 = vmul.f32 %v147, %v147
    %v180 = vmul.f32 %v148, %v148
    %v181 = vmul.f32 %v149, %v149
    %v182 = vmul.f32 %v150, %v150
    %v183 = vmul.f32 %v151, %v151
    %v184 = vmul.f32 %v152, %v152
    %v185 = vmul.f32 %v153, %v153
    %v186 = vmul.f32 %v154, %v154
    %v187 = vmul.f32 %v155, %v155
    %v188 = vmul.f32 %v156, %v156
    %v189 = vmul.f32 %v157, %v157
    %v190 = vmul.f32 %v158, %v158
    %v191 = vmul.f32 %v159, %v159
    %v192 = vmul.f32 %v160, %v160
    %v193 = vsub.f32 %v161, %v177
    %v194 = vsub.f32 %v162, %v178
    %v195 = vsub.f32 %v163, %v179
    %v196 = vsub.f32 %v164, %v180
    %v197 = vsub.f32 %v165, %v181
    %v198 = vsub.f32 %v166, %v182
    %v199 = vsub.f32 %v167, %v183
    %v200 = vsub.f32 %v168, %v184
    %v201 = vsub.f32 %v169, %v185
    %v202 = vsub.f32 %v170, %v186
    %v203 = vsub.f32 %v171, %v187
    %v204 = vsub.f32 %v172, %v188
    %v205 = vsub.f32 %v173, %v189
    %v206 = vsub.f32 %v174, %v190
    %v207 = vsub.f32 %v175, %v191
    %v208 = vsub.f32 %v176, %v192
    %v209 = vadd.f32 %v193, 1e-05
    %v210 = vadd.f32 %v194, 1e-05
    %v211 = vadd.f32 %v195, 1e-05
    %v212 = vadd.f32 %v196, 1e-05
    %v213 = vadd.f32 %v197, 1e-05
    %v214 = vadd.f32 %v198, 1e-05
    %v215 = vadd.f32 %v199, 1e-05
    %v216 = vadd.f32 %v200, 1e-05
    %v217 = vadd.f32 %v201, 1e-05
    %v218 = vadd.f32 %v202, 1e-05
    %v219 = vadd.f32 %v203, 1e-05
    %v220 = vadd.f32 %v204, 1e-05
    %v221 = vadd.f32 %v205, 1e-05
    %v222 = vadd.f32 %v206, 1e-05
    %v223 = vadd.f32 %v207, 1e-05
    %v224 = vadd.f32 %v208, 1e-05
    %v225 = vrsqrt.pop %v209
    %v226 = vrsqrt.pop %v210
    %v227 = vrsqrt.pop %v211
    %v228 = vrsqrt.pop %v212
    %v229 = vrsqrt.pop %v213
    %v230 = vrsqrt.pop %v214
    %v231 = vrsqrt.pop %v215
    %v232 = vrsqrt.pop %v216
    %v233 = vrsqrt.pop %v217
    %v234 = vrsqrt.pop %v218
    %v235 = vrsqrt.pop %v219
    %v236 = vrsqrt.pop %v220
    %v237 = vrsqrt.pop %v221
    %v238 = vrsqrt.pop %v222
    %v239 = vrsqrt.pop %v223
    %v240 = vrsqrt.pop %v224
    %v241 = vsub.f32 %v49, %v145
    %v242 = vsub.f32 %v50, %v146
    %v243 = vsub.f32 %v51, %v147
    %v244 = vsub.f32 %v52, %v148
    %v245 = vsub.f32 %v53, %v149
    %v246 = vsub.f32 %v54, %v150
    %v247 = vsub.f32 %v55, %v151
    %v248 = vsub.f32 %v56, %v152
    %v249 = vsub.f32 %v57, %v153
    %v250 = vsub.f32 %v58, %v154
    %v251 = vsub.f32 %v59, %v155
    %v252 = vsub.f32 %v60, %v156
    %v253 = vsub.f32 %v61, %v157
    %v254 = vsub.f32 %v62, %v158
    %v255 = vsub.f32 %v63, %v159
    %v256 = vsub.f32 %v64, %v160
    %v257 = vmul.f32 %v241, %v225
    %v258 = vmul.f32 %v242, %v226
    %v259 = vmul.f32 %v243, %v227
    %v260 = vmul.f32 %v244, %v228
    %v261 = vmul.f32 %v245, %v229
    %v262 = vmul.f32 %v246, %v230
    %v263 = vmul.f32 %v247, %v231
    %v264 = vmul.f32 %v248, %v232
    %v265 = vmul.f32 %v249, %v233
    %v266 = vmul.f32 %v250, %v234
    %v267 = vmul.f32 %v251, %v235
    %v268 = vmul.f32 %v252, %v236
    %v269 = vmul.f32 %v253, %v237
    %v270 = vmul.f32 %v254, %v238
    %v271 = vmul.f32 %v255, %v239
    %v272 = vmul.f32 %v256, %v240
    %v273 = vld [vmem:[%s1] sm:$0x1]
    %v275 = vlaneseq
    %v276 = vshrl.u32 %v275, 7
    %v277 = vsub.s32 0, %v276
    %v278 = vrot.slane %v273, %v277
    %v280 = vmul.f32 %v257, %v278
    %v281 = vmul.f32 %v258, %v278
    %v282 = vmul.f32 %v259, %v278
    %v283 = vmul.f32 %v260, %v278
    %v284 = vmul.f32 %v261, %v278
    %v285 = vmul.f32 %v262, %v278
    %v286 = vmul.f32 %v263, %v278
    %v287 = vmul.f32 %v264, %v278
    %v288 = vmul.f32 %v265, %v278
    %v289 = vmul.f32 %v266, %v278
    %v290 = vmul.f32 %v267, %v278
    %v291 = vmul.f32 %v268, %v278
    %v292 = vmul.f32 %v269, %v278
    %v293 = vmul.f32 %v270, %v278
    %v294 = vmul.f32 %v271, %v278
    %v295 = vmul.f32 %v272, %v278
    %v296 = vld [vmem:[%s2] sm:$0x1]
    %v298 = vlaneseq
    %v299 = vshrl.u32 %v298, 7
    %v300 = vsub.s32 0, %v299
    %v301 = vrot.slane %v296, %v300
    %v303 = vadd.f32 %v280, %v301
    %v304 = vadd.f32 %v281, %v301
    %v305 = vadd.f32 %v282, %v301
    %v306 = vadd.f32 %v283, %v301
    %v307 = vadd.f32 %v284, %v301
    %v308 = vadd.f32 %v285, %v301
    %v309 = vadd.f32 %v286, %v301
    %v310 = vadd.f32 %v287, %v301
    %v311 = vadd.f32 %v288, %v301
    %v312 = vadd.f32 %v289, %v301
    %v313 = vadd.f32 %v290, %v301
    %v314 = vadd.f32 %v291, %v301
    %v315 = vadd.f32 %v292, %v301
    %v316 = vadd.f32 %v293, %v301
    %v317 = vadd.f32 %v294, %v301
    %v318 = vadd.f32 %v295, %v301
    %v319 = vld [vmem:[#allocation5] sm:$0xff]
    %v320 = vld [vmem:[#allocation5 + $0x8] sm:$0xff]
    %v321 = vld [vmem:[#allocation5 + $0x10] sm:$0xff]
    %v322 = vld [vmem:[#allocation5 + $0x18] sm:$0xff]
    %v323 = vld [vmem:[#allocation5 + $0x20] sm:$0xff]
    %v324 = vld [vmem:[#allocation5 + $0x28] sm:$0xff]
    %v325 = vld [vmem:[#allocation5 + $0x30] sm:$0xff]
    %v326 = vld [vmem:[#allocation5 + $0x38] sm:$0xff]
    %v327 = vld [vmem:[#allocation5 + $0x40] sm:$0xff]
    %v328 = vld [vmem:[#allocation5 + $0x48] sm:$0xff]
    %v329 = vld [vmem:[#allocation5 + $0x50] sm:$0xff]
    %v330 = vld [vmem:[#allocation5 + $0x58] sm:$0xff]
    %v331 = vld [vmem:[#allocation5 + $0x60] sm:$0xff]
    %v332 = vld [vmem:[#allocation5 + $0x68] sm:$0xff]
    %v333 = vld [vmem:[#allocation5 + $0x70] sm:$0xff]
    %v334 = vld [vmem:[#allocation5 + $0x78] sm:$0xff]
    %v335 = vld [vmem:[%s4] sm:$0x1]
    %v337 = vlaneseq
    %v338 = vshrl.u32 %v337, 7
    %v339 = vsub.s32 0, %v338
    %v340 = vrot.slane %v335, %v339
    %342 = vmatprep.subr.mxu0 0.0
    %v343 = vand.u32 %v319, 4294901760
    %344 = vmatpush1.msra.mxu0 %v343
    %345 = vmatprep.subr.mxu0 0.0
    %v346 = vand.u32 %v320, 4294901760
    %347 = vmatpush1.msra.mxu0 %v346
    %348 = vmatprep.subr.mxu0 0.0
    %v349 = vand.u32 %v321, 4294901760
    %350 = vmatpush1.msra.mxu0 %v349
    %351 = vmatprep.subr.mxu0 0.0
    %v352 = vand.u32 %v322, 4294901760
    %353 = vmatpush1.msra.mxu0 %v352
    %354 = vmatprep.subr.mxu0 0.0
    %v355 = vand.u32 %v323, 4294901760
    %356 = vmatpush1.msra.mxu0 %v355
    %357 = vmatprep.subr.mxu0 0.0
    %v358 = vand.u32 %v324, 4294901760
    %359 = vmatpush1.msra.mxu0 %v358
    %360 = vmatprep.subr.mxu0 0.0
    %v361 = vand.u32 %v325, 4294901760
    %362 = vmatpush1.msra.mxu0 %v361
    %363 = vmatprep.subr.mxu0 0.0
    %v364 = vand.u32 %v326, 4294901760
    %365 = vmatpush1.msra.mxu0 %v364
    %366 = vmatprep.subr.mxu0 0.0
    %v367 = vand.u32 %v327, 4294901760
    %368 = vmatpush1.msra.mxu0 %v367
    %369 = vmatprep.subr.mxu0 0.0
    %v370 = vand.u32 %v328, 4294901760
    %371 = vmatpush1.msra.mxu0 %v370
    %372 = vmatprep.subr.mxu0 0.0
    %v373 = vand.u32 %v329, 4294901760
    %374 = vmatpush1.msra.mxu0 %v373
    %375 = vmatprep.subr.mxu0 0.0
    %v376 = vand.u32 %v330, 4294901760
    %377 = vmatpush1.msra.mxu0 %v376
    %378 = vmatprep.subr.mxu0 0.0
    %v379 = vand.u32 %v331, 4294901760
    %380 = vmatpush1.msra.mxu0 %v379
    %381 = vmatprep.subr.mxu0 0.0
    %v382 = vand.u32 %v332, 4294901760
    %383 = vmatpush1.msra.mxu0 %v382
    %384 = vmatprep.subr.mxu0 0.0
    %v385 = vand.u32 %v333, 4294901760
    %386 = vmatpush1.msra.mxu0 %v385
    %387 = vmatprep.subr.mxu0 0.0
    %v388 = vand.u32 %v334, 4294901760
    %389 = vmatpush1.msra.mxu0 %v388
    %390 = vmatprep.subr.mxu0 0.0
    %391 = vmatpush1.msra.mxu0 0.0
    %392 = vmatprep.subr.mxu0 0.0
    %393 = vmatpush1.msra.mxu0 0.0
    %394 = vmatprep.subr.mxu0 0.0
    %395 = vmatpush1.msra.mxu0 0.0
    %396 = vmatprep.subr.mxu0 0.0
    %397 = vmatpush1.msra.mxu0 0.0
    %398 = vmatprep.subr.mxu0 0.0
    %399 = vmatpush1.msra.mxu0 0.0
    %400 = vmatprep.subr.mxu0 0.0
    %401 = vmatpush1.msra.mxu0 0.0
    %402 = vmatprep.subr.mxu0 0.0
    %403 = vmatpush1.msra.mxu0 0.0
    %404 = vmatprep.subr.mxu0 0.0
    %405 = vmatpush1.msra.mxu0 0.0
    %406 = vmatprep.subr.mxu0 0.0
    %407 = vmatpush1.msra.mxu0 0.0
    %408 = vmatprep.subr.mxu0 0.0
    %409 = vmatpush1.msra.mxu0 0.0
    %410 = vmatprep.subr.mxu0 0.0
    %411 = vmatpush1.msra.mxu0 0.0
    %412 = vmatprep.subr.mxu0 0.0
    %413 = vmatpush1.msra.mxu0 0.0
    %414 = vmatprep.subr.mxu0 0.0
    %415 = vmatpush1.msra.mxu0 0.0
    %416 = vmatprep.subr.mxu0 0.0
    %417 = vmatpush1.msra.mxu0 0.0
    %418 = vmatprep.subr.mxu0 0.0
    %419 = vmatpush1.msra.mxu0 0.0
    %420 = vmatprep.subr.mxu0 0.0
    %421 = vmatpush1.msra.mxu0 0.0
    %422 = vmatprep.mubr.f32.mxu0 0.0
    %v423 = vand.u32 %v303, 4294901760
    %v424 = vsub.f32 %v303, %v423
    %v425 = vand.u32 %v424, 4294901760
    %v426 = vsub.f32 %v424, %v425
    %v427 = vand.u32 %v426, 4294901760
    %428 = vmatmul.mubr.f32.gmra.mrb[0].mxu0 %v427
    %v429 = vpop.f32.mrb[0].mxu0
    %v430 = vadd.f32 %v340, %v429
    %v431 = vpop.f32.mrb[0].mxu0
    %432 = vmatprep.mubr.f32.mxu0 0.0
    %v433 = vand.u32 %v304, 4294901760
    %v434 = vsub.f32 %v304, %v433
    %v435 = vand.u32 %v434, 4294901760
    %v436 = vsub.f32 %v434, %v435
    %v437 = vand.u32 %v436, 4294901760
    %438 = vmatmul.mubr.f32.gmra.mrb[0].mxu0 %v437
    %v439 = vpop.f32.mrb[0].mxu0
    %v440 = vadd.f32 %v340, %v439
    %v441 = vpop.f32.mrb[0].mxu0
    %442 = vmatprep.mubr.f32.mxu0 0.0
    %v443 = vand.u32 %v305, 4294901760
    %v444 = vsub.f32 %v305, %v443
    %v445 = vand.u32 %v444, 4294901760
    %v446 = vsub.f32 %v444, %v445
    %v447 = vand.u32 %v446, 4294901760
    %448 = vmatmul.mubr.f32.gmra.mrb[0].mxu0 %v447
    %v449 = vpop.f32.mrb[0].mxu0
    %v450 = vadd.f32 %v340, %v449
    %v451 = vpop.f32.mrb[0].mxu0
    %452 = vmatprep.mubr.f32.mxu0 0.0
    %v453 = vand.u32 %v306, 4294901760
    %v454 = vsub.f32 %v306, %v453
    %v455 = vand.u32 %v454, 4294901760
    %v456 = vsub.f32 %v454, %v455
    %v457 = vand.u32 %v456, 4294901760
    %458 = vmatmul.mubr.f32.gmra.mrb[0].mxu0 %v457
    %v459 = vpop.f32.mrb[0].mxu0
    %v460 = vadd.f32 %v340, %v459
    %v461 = vpop.f32.mrb[0].mxu0
    %462 = vmatprep.mubr.f32.mxu0 0.0
    %v463 = vand.u32 %v307, 4294901760
    %v464 = vsub.f32 %v307, %v463
    %v465 = vand.u32 %v464, 4294901760
    %v466 = vsub.f32 %v464, %v465
    %v467 = vand.u32 %v466, 4294901760
    %468 = vmatmul.mubr.f32.gmra.mrb[0].mxu0 %v467
    %v469 = vpop.f32.mrb[0].mxu0
    %v470 = vadd.f32 %v340, %v469
    %v471 = vpop.f32.mrb[0].mxu0
    %472 = vmatprep.mubr.f32.mxu0 0.0
    %v473 = vand.u32 %v308, 4294901760
    %v474 = vsub.f32 %v308, %v473
    %v475 = vand.u32 %v474, 4294901760
    %v476 = vsub.f32 %v474, %v475
    %v477 = vand.u32 %v476, 4294901760
    %478 = vmatmul.mubr.f32.gmra.mrb[0].mxu0 %v477
    %v479 = vpop.f32.mrb[0].mxu0
    %v480 = vadd.f32 %v340, %v479
    %v481 = vpop.f32.mrb[0].mxu0
    %482 = vmatprep.mubr.f32.mxu0 0.0
    %v483 = vand.u32 %v309, 4294901760
    %v484 = vsub.f32 %v309, %v483
    %v485 = vand.u32 %v484, 4294901760
    %v486 = vsub.f32 %v484, %v485
    %v487 = vand.u32 %v486, 4294901760
    %488 = vmatmul.mubr.f32.gmra.mrb[0].mxu0 %v487
    %v489 = vpop.f32.mrb[0].mxu0
    %v490 = vadd.f32 %v340, %v489
    %v491 = vpop.f32.mrb[0].mxu0
    %492 = vmatprep.mubr.f32.mxu0 0.0
    %v493 = vand.u32 %v310, 4294901760
    %v494 = vsub.f32 %v310, %v493
    %v495 = vand.u32 %v494, 4294901760
    %v496 = vsub.f32 %v494, %v495
    %v497 = vand.u32 %v496, 4294901760
    %498 = vmatmul.mubr.f32.gmra.mrb[0].mxu0 %v497
    %v499 = vpop.f32.mrb[0].mxu0
    %v500 = vadd.f32 %v340, %v499
    %v501 = vpop.f32.mrb[0].mxu0
    %502 = vmatprep.mubr.f32.mxu0 0.0
    %v503 = vand.u32 %v311, 4294901760
    %v504 = vsub.f32 %v311, %v503
    %v505 = vand.u32 %v504, 4294901760
    %v506 = vsub.f32 %v504, %v505
    %v507 = vand.u32 %v506, 4294901760
    %508 = vmatmul.mubr.f32.gmra.mrb[0].mxu0 %v507
    %v509 = vpop.f32.mrb[0].mxu0
    %v510 = vadd.f32 %v340, %v509
    %v511 = vpop.f32.mrb[0].mxu0
    %512 = vmatprep.mubr.f32.mxu0 0.0
    %v513 = vand.u32 %v312, 4294901760
    %v514 = vsub.f32 %v312, %v513
    %v515 = vand.u32 %v514, 4294901760
    %v516 = vsub.f32 %v514, %v515
    %v517 = vand.u32 %v516, 4294901760
    %518 = vmatmul.mubr.f32.gmra.mrb[0].mxu0 %v517
    %v519 = vpop.f32.mrb[0].mxu0
    %v520 = vadd.f32 %v340, %v519
    %v521 = vpop.f32.mrb[0].mxu0
    %522 = vmatprep.mubr.f32.mxu0 0.0
    %v523 = vand.u32 %v313, 4294901760
    %v524 = vsub.f32 %v313, %v523
    %v525 = vand.u32 %v524, 4294901760
    %v526 = vsub.f32 %v524, %v525
    %v527 = vand.u32 %v526, 4294901760
    %528 = vmatmul.mubr.f32.gmra.mrb[0].mxu0 %v527
    %v529 = vpop.f32.mrb[0].mxu0
    %v530 = vadd.f32 %v340, %v529
    %v531 = vpop.f32.mrb[0].mxu0
    %532 = vmatprep.mubr.f32.mxu0 0.0
    %v533 = vand.u32 %v314, 4294901760
    %v534 = vsub.f32 %v314, %v533
    %v535 = vand.u32 %v534, 4294901760
    %v536 = vsub.f32 %v534, %v535
    %v537 = vand.u32 %v536, 4294901760
    %538 = vmatmul.mubr.f32.gmra.mrb[0].mxu0 %v537
    %v539 = vpop.f32.mrb[0].mxu0
    %v540 = vadd.f32 %v340, %v539
    %v541 = vpop.f32.mrb[0].mxu0
    %542 = vmatprep.mubr.f32.mxu0 0.0
    %v543 = vand.u32 %v315, 4294901760
    %v544 = vsub.f32 %v315, %v543
    %v545 = vand.u32 %v544, 4294901760
    %v546 = vsub.f32 %v544, %v545
    %v547 = vand.u32 %v546, 4294901760
    %548 = vmatmul.mubr.f32.gmra.mrb[0].mxu0 %v547
    %v549 = vpop.f32.mrb[0].mxu0
    %v550 = vadd.f32 %v340, %v549
    %v551 = vpop.f32.mrb[0].mxu0
    %552 = vmatprep.mubr.f32.mxu0 0.0
    %v553 = vand.u32 %v316, 4294901760
    %v554 = vsub.f32 %v316, %v553
    %v555 = vand.u32 %v554, 4294901760
    %v556 = vsub.f32 %v554, %v555
    %v557 = vand.u32 %v556, 4294901760
    %558 = vmatmul.mubr.f32.gmra.mrb[0].mxu0 %v557
    %v559 = vpop.f32.mrb[0].mxu0
    %v560 = vadd.f32 %v340, %v559
    %v561 = vpop.f32.mrb[0].mxu0
    %562 = vmatprep.mubr.f32.mxu0 0.0
    %v563 = vand.u32 %v317, 4294901760
    %v564 = vsub.f32 %v317, %v563
    %v565 = vand.u32 %v564, 4294901760
    %v566 = vsub.f32 %v564, %v565
    %v567 = vand.u32 %v566, 4294901760
    %568 = vmatmul.mubr.f32.gmra.mrb[0].mxu0 %v567
    %v569 = vpop.f32.mrb[0].mxu0
    %v570 = vadd.f32 %v340, %v569
    %v571 = vpop.f32.mrb[0].mxu0
    %572 = vmatprep.mubr.f32.mxu0 0.0
    %v573 = vand.u32 %v318, 4294901760
    %v574 = vsub.f32 %v318, %v573
    %v575 = vand.u32 %v574, 4294901760
    %v576 = vsub.f32 %v574, %v575
    %v577 = vand.u32 %v576, 4294901760
    %578 = vmatmul.mubr.f32.gmra.mrb[0].mxu0 %v577
    %v579 = vpop.f32.mrb[0].mxu0
    %v580 = vadd.f32 %v340, %v579
    %v581 = vpop.f32.mrb[0].mxu0
    %582 = vdwg.mxu0
    %583 = vmatprep.subr.mxu0 0.0
    %v584 = vand.u32 %v319, 4294901760
    %v585 = vsub.f32 %v319, %v584
    %v586 = vand.u32 %v585, 4294901760
    %v587 = vsub.f32 %v585, %v586
    %v588 = vand.u32 %v587, 4294901760
    %589 = vmatpush1.msra.mxu0 %v588
    %590 = vmatprep.subr.mxu0 0.0
    %v591 = vand.u32 %v320, 4294901760
    %v592 = vsub.f32 %v320, %v591
    %v593 = vand.u32 %v592, 4294901760
    %v594 = vsub.f32 %v592, %v593
    %v595 = vand.u32 %v594, 4294901760
    %596 = vmatpush1.msra.mxu0 %v595
    %597 = vmatprep.subr.mxu0 0.0
    %v598 = vand.u32 %v321, 4294901760
    %v599 = vsub.f32 %v321, %v598
    %v600 = vand.u32 %v599, 4294901760
    %v601 = vsub.f32 %v599, %v600
    %v602 = vand.u32 %v601, 4294901760
    %603 = vmatpush1.msra.mxu0 %v602
    %604 = vmatprep.subr.mxu0 0.0
    %v605 = vand.u32 %v322, 4294901760
    %v606 = vsub.f32 %v322, %v605
    %v607 = vand.u32 %v606, 4294901760
    %v608 = vsub.f32 %v606, %v607
    %v609 = vand.u32 %v608, 4294901760
    %610 = vmatpush1.msra.mxu0 %v609
    %611 = vmatprep.subr.mxu0 0.0
    %v612 = vand.u32 %v323, 4294901760
    %v613 = vsub.f32 %v323, %v612
    %v614 = vand.u32 %v613, 4294901760
    %v615 = vsub.f32 %v613, %v614
    %v616 = vand.u32 %v615, 4294901760
    %617 = vmatpush1.msra.mxu0 %v616
    %618 = vmatprep.subr.mxu0 0.0
    %v619 = vand.u32 %v324, 4294901760
    %v620 = vsub.f32 %v324, %v619
    %v621 = vand.u32 %v620, 4294901760
    %v622 = vsub.f32 %v620, %v621
    %v623 = vand.u32 %v622, 4294901760
    %624 = vmatpush1.msra.mxu0 %v623
    %625 = vmatprep.subr.mxu0 0.0
    %v626 = vand.u32 %v325, 4294901760
    %v627 = vsub.f32 %v325, %v626
    %v628 = vand.u32 %v627, 4294901760
    %v629 = vsub.f32 %v627, %v628
    %v630 = vand.u32 %v629, 4294901760
    %631 = vmatpush1.msra.mxu0 %v630
    %632 = vmatprep.subr.mxu0 0.0
    %v633 = vand.u32 %v326, 4294901760
    %v634 = vsub.f32 %v326, %v633
    %v635 = vand.u32 %v634, 4294901760
    %v636 = vsub.f32 %v634, %v635
    %v637 = vand.u32 %v636, 4294901760
    %638 = vmatpush1.msra.mxu0 %v637
    %639 = vmatprep.subr.mxu0 0.0
    %v640 = vand.u32 %v327, 4294901760
    %v641 = vsub.f32 %v327, %v640
    %v642 = vand.u32 %v641, 4294901760
    %v643 = vsub.f32 %v641, %v642
    %v644 = vand.u32 %v643, 4294901760
    %645 = vmatpush1.msra.mxu0 %v644
    %646 = vmatprep.subr.mxu0 0.0
    %v647 = vand.u32 %v328, 4294901760
    %v648 = vsub.f32 %v328, %v647
    %v649 = vand.u32 %v648, 4294901760
    %v650 = vsub.f32 %v648, %v649
    %v651 = vand.u32 %v650, 4294901760
    %652 = vmatpush1.msra.mxu0 %v651
    %653 = vmatprep.subr.mxu0 0.0
    %v654 = vand.u32 %v329, 4294901760
    %v655 = vsub.f32 %v329, %v654
    %v656 = vand.u32 %v655, 4294901760
    %v657 = vsub.f32 %v655, %v656
    %v658 = vand.u32 %v657, 4294901760
    %659 = vmatpush1.msra.mxu0 %v658
    %660 = vmatprep.subr.mxu0 0.0
    %v661 = vand.u32 %v330, 4294901760
    %v662 = vsub.f32 %v330, %v661
    %v663 = vand.u32 %v662, 4294901760
    %v664 = vsub.f32 %v662, %v663
    %v665 = vand.u32 %v664, 4294901760
    %666 = vmatpush1.msra.mxu0 %v665
    %667 = vmatprep.subr.mxu0 0.0
    %v668 = vand.u32 %v331, 4294901760
    %v669 = vsub.f32 %v331, %v668
    %v670 = vand.u32 %v669, 4294901760
    %v671 = vsub.f32 %v669, %v670
    %v672 = vand.u32 %v671, 4294901760
    %673 = vmatpush1.msra.mxu0 %v672
    %674 = vmatprep.subr.mxu0 0.0
    %v675 = vand.u32 %v332, 4294901760
    %v676 = vsub.f32 %v332, %v675
    %v677 = vand.u32 %v676, 4294901760
    %v678 = vsub.f32 %v676, %v677
    %v679 = vand.u32 %v678, 4294901760
    %680 = vmatpush1.msra.mxu0 %v679
    %681 = vmatprep.subr.mxu0 0.0
    %v682 = vand.u32 %v333, 4294901760
    %v683 = vsub.f32 %v333, %v682
    %v684 = vand.u32 %v683, 4294901760
    %v685 = vsub.f32 %v683, %v684
    %v686 = vand.u32 %v685, 4294901760
    %687 = vmatpush1.msra.mxu0 %v686
    %688 = vmatprep.subr.mxu0 0.0
    %v689 = vand.u32 %v334, 4294901760
    %v690 = vsub.f32 %v334, %v689
    %v691 = vand.u32 %v690, 4294901760
    %v692 = vsub.f32 %v690, %v691
    %v693 = vand.u32 %v692, 4294901760
    %694 = vmatpush1.msra.mxu0 %v693
    %695 = vmatprep.subr.mxu0 0.0
    %696 = vmatpush1.msra.mxu0 0.0
    %697 = vmatprep.subr.mxu0 0.0
    %698 = vmatpush1.msra.mxu0 0.0
    %699 = vmatprep.subr.mxu0 0.0
    %700 = vmatpush1.msra.mxu0 0.0
    %701 = vmatprep.subr.mxu0 0.0
    %702 = vmatpush1.msra.mxu0 0.0
    %703 = vmatprep.subr.mxu0 0.0
    %704 = vmatpush1.msra.mxu0 0.0
    %705 = vmatprep.subr.mxu0 0.0
    %706 = vmatpush1.msra.mxu0 0.0
    %707 = vmatprep.subr.mxu0 0.0
    %708 = vmatpush1.msra.mxu0 0.0
    %709 = vmatprep.subr.mxu0 0.0
    %710 = vmatpush1.msra.mxu0 0.0
    %711 = vmatprep.subr.mxu0 0.0
    %712 = vmatpush1.msra.mxu0 0.0
    %713 = vmatprep.subr.mxu0 0.0
    %714 = vmatpush1.msra.mxu0 0.0
    %715 = vmatprep.subr.mxu0 0.0
    %716 = vmatpush1.msra.mxu0 0.0
    %717 = vmatprep.subr.mxu0 0.0
    %718 = vmatpush1.msra.mxu0 0.0
    %719 = vmatprep.subr.mxu0 0.0
    %720 = vmatpush1.msra.mxu0 0.0
    %721 = vmatprep.subr.mxu0 0.0
    %722 = vmatpush1.msra.mxu0 0.0
    %723 = vmatprep.subr.mxu0 0.0
    %724 = vmatpush1.msra.mxu0 0.0
    %725 = vmatprep.subr.mxu0 0.0
    %726 = vmatpush1.msra.mxu0 0.0
    %727 = vmatprep.mubr.f32.mxu0 0.0
    %v728 = vand.u32 %v303, 4294901760
    %729 = vmatmul.mubr.f32.gmra.mrb[0].mxu0 %v728
    %v730 = vpop.f32.mrb[0].mxu0
    %v731 = vadd.f32 %v430, %v730
    %v732 = vpop.f32.mrb[0].mxu0
    %733 = vmatprep.mubr.f32.mxu0 0.0
    %v734 = vand.u32 %v304, 4294901760
    %735 = vmatmul.mubr.f32.gmra.mrb[0].mxu0 %v734
    %v736 = vpop.f32.mrb[0].mxu0
    %v737 = vadd.f32 %v440, %v736
    %v738 = vpop.f32.mrb[0].mxu0
    %739 = vmatprep.mubr.f32.mxu0 0.0
    %v740 = vand.u32 %v305, 4294901760
    %741 = vmatmul.mubr.f32.gmra.mrb[0].mxu0 %v740
    %v742 = vpop.f32.mrb[0].mxu0
    %v743 = vadd.f32 %v450, %v742
    %v744 = vpop.f32.mrb[0].mxu0
    %745 = vmatprep.mubr.f32.mxu0 0.0
    %v746 = vand.u32 %v306, 4294901760
    %747 = vmatmul.mubr.f32.gmra.mrb[0].mxu0 %v746
    %v748 = vpop.f32.mrb[0].mxu0
    %v749 = vadd.f32 %v460, %v748
    %v750 = vpop.f32.mrb[0].mxu0
    %751 = vmatprep.mubr.f32.mxu0 0.0
    %v752 = vand.u32 %v307, 4294901760
    %753 = vmatmul.mubr.f32.gmra.mrb[0].mxu0 %v752
    %v754 = vpop.f32.mrb[0].mxu0
    %v755 = vadd.f32 %v470, %v754
    %v756 = vpop.f32.mrb[0].mxu0
    %757 = vmatprep.mubr.f32.mxu0 0.0
    %v758 = vand.u32 %v308, 4294901760
    %759 = vmatmul.mubr.f32.gmra.mrb[0].mxu0 %v758
    %v760 = vpop.f32.mrb[0].mxu0
    %v761 = vadd.f32 %v480, %v760
    %v762 = vpop.f32.mrb[0].mxu0
    %763 = vmatprep.mubr.f32.mxu0 0.0
    %v764 = vand.u32 %v309, 4294901760
    %765 = vmatmul.mubr.f32.gmra.mrb[0].mxu0 %v764
    %v766 = vpop.f32.mrb[0].mxu0
    %v767 = vadd.f32 %v490, %v766
    %v768 = vpop.f32.mrb[0].mxu0
    %769 = vmatprep.mubr.f32.mxu0 0.0
    %v770 = vand.u32 %v310, 4294901760
    %771 = vmatmul.mubr.f32.gmra.mrb[0].mxu0 %v770
    %v772 = vpop.f32.mrb[0].mxu0
    %v773 = vadd.f32 %v500, %v772
    %v774 = vpop.f32.mrb[0].mxu0
    %775 = vmatprep.mubr.f32.mxu0 0.0
    %v776 = vand.u32 %v311, 4294901760
    %777 = vmatmul.mubr.f32.gmra.mrb[0].mxu0 %v776
    %v778 = vpop.f32.mrb[0].mxu0
    %v779 = vadd.f32 %v510, %v778
    %v780 = vpop.f32.mrb[0].mxu0
    %781 = vmatprep.mubr.f32.mxu0 0.0
    %v782 = vand.u32 %v312, 4294901760
    %783 = vmatmul.mubr.f32.gmra.mrb[0].mxu0 %v782
    %v784 = vpop.f32.mrb[0].mxu0
    %v785 = vadd.f32 %v520, %v784
    %v786 = vpop.f32.mrb[0].mxu0
    %787 = vmatprep.mubr.f32.mxu0 0.0
    %v788 = vand.u32 %v313, 4294901760
    %789 = vmatmul.mubr.f32.gmra.mrb[0].mxu0 %v788
    %v790 = vpop.f32.mrb[0].mxu0
    %v791 = vadd.f32 %v530, %v790
    %v792 = vpop.f32.mrb[0].mxu0
    %793 = vmatprep.mubr.f32.mxu0 0.0
    %v794 = vand.u32 %v314, 4294901760
    %795 = vmatmul.mubr.f32.gmra.mrb[0].mxu0 %v794
    %v796 = vpop.f32.mrb[0].mxu0
    %v797 = vadd.f32 %v540, %v796
    %v798 = vpop.f32.mrb[0].mxu0
    %799 = vmatprep.mubr.f32.mxu0 0.0
    %v800 = vand.u32 %v315, 4294901760
    %801 = vmatmul.mubr.f32.gmra.mrb[0].mxu0 %v800
    %v802 = vpop.f32.mrb[0].mxu0
    %v803 = vadd.f32 %v550, %v802
    %v804 = vpop.f32.mrb[0].mxu0
    %805 = vmatprep.mubr.f32.mxu0 0.0
    %v806 = vand.u32 %v316, 4294901760
    %807 = vmatmul.mubr.f32.gmra.mrb[0].mxu0 %v806
    %v808 = vpop.f32.mrb[0].mxu0
    %v809 = vadd.f32 %v560, %v808
    %v810 = vpop.f32.mrb[0].mxu0
    %811 = vmatprep.mubr.f32.mxu0 0.0
    %v812 = vand.u32 %v317, 4294901760
    %813 = vmatmul.mubr.f32.gmra.mrb[0].mxu0 %v812
    %v814 = vpop.f32.mrb[0].mxu0
    %v815 = vadd.f32 %v570, %v814
    %v816 = vpop.f32.mrb[0].mxu0
    %817 = vmatprep.mubr.f32.mxu0 0.0
    %v818 = vand.u32 %v318, 4294901760
    %819 = vmatmul.mubr.f32.gmra.mrb[0].mxu0 %v818
    %v820 = vpop.f32.mrb[0].mxu0
    %v821 = vadd.f32 %v580, %v820
    %v822 = vpop.f32.mrb[0].mxu0
    %823 = vdwg.mxu0
    %824 = vmatprep.subr.mxu0 0.0
    %v825 = vand.u32 %v319, 4294901760
    %v826 = vsub.f32 %v319, %v825
    %827 = vmatpush1.msra.mxu0 %v826
    %828 = vmatprep.subr.mxu0 0.0
    %v829 = vand.u32 %v320, 4294901760
    %v830 = vsub.f32 %v320, %v829
    %831 = vmatpush1.msra.mxu0 %v830
    %832 = vmatprep.subr.mxu0 0.0
    %v833 = vand.u32 %v321, 4294901760
    %v834 = vsub.f32 %v321, %v833
    %835 = vmatpush1.msra.mxu0 %v834
    %836 = vmatprep.subr.mxu0 0.0
    %v837 = vand.u32 %v322, 4294901760
    %v838 = vsub.f32 %v322, %v837
    %839 = vmatpush1.msra.mxu0 %v838
    %840 = vmatprep.subr.mxu0 0.0
    %v841 = vand.u32 %v323, 4294901760
    %v842 = vsub.f32 %v323, %v841
    %843 = vmatpush1.msra.mxu0 %v842
    %844 = vmatprep.subr.mxu0 0.0
    %v845 = vand.u32 %v324, 4294901760
    %v846 = vsub.f32 %v324, %v845
    %847 = vmatpush1.msra.mxu0 %v846
    %848 = vmatprep.subr.mxu0 0.0
    %v849 = vand.u32 %v325, 4294901760
    %v850 = vsub.f32 %v325, %v849
    %851 = vmatpush1.msra.mxu0 %v850
    %852 = vmatprep.subr.mxu0 0.0
    %v853 = vand.u32 %v326, 4294901760
    %v854 = vsub.f32 %v326, %v853
    %855 = vmatpush1.msra.mxu0 %v854
    %856 = vmatprep.subr.mxu0 0.0
    %v857 = vand.u32 %v327, 4294901760
    %v858 = vsub.f32 %v327, %v857
    %859 = vmatpush1.msra.mxu0 %v858
    %860 = vmatprep.subr.mxu0 0.0
    %v861 = vand.u32 %v328, 4294901760
    %v862 = vsub.f32 %v328, %v861
    %863 = vmatpush1.msra.mxu0 %v862
    %864 = vmatprep.subr.mxu0 0.0
    %v865 = vand.u32 %v329, 4294901760
    %v866 = vsub.f32 %v329, %v865
    %867 = vmatpush1.msra.mxu0 %v866
    %868 = vmatprep.subr.mxu0 0.0
    %v869 = vand.u32 %v330, 4294901760
    %v870 = vsub.f32 %v330, %v869
    %871 = vmatpush1.msra.mxu0 %v870
    %872 = vmatprep.subr.mxu0 0.0
    %v873 = vand.u32 %v331, 4294901760
    %v874 = vsub.f32 %v331, %v873
    %875 = vmatpush1.msra.mxu0 %v874
    %876 = vmatprep.subr.mxu0 0.0
    %v877 = vand.u32 %v332, 4294901760
    %v878 = vsub.f32 %v332, %v877
    %879 = vmatpush1.msra.mxu0 %v878
    %880 = vmatprep.subr.mxu0 0.0
    %v881 = vand.u32 %v333, 4294901760
    %v882 = vsub.f32 %v333, %v881
    %883 = vmatpush1.msra.mxu0 %v882
    %884 = vmatprep.subr.mxu0 0.0
    %v885 = vand.u32 %v334, 4294901760
    %v886 = vsub.f32 %v334, %v885
    %887 = vmatpush1.msra.mxu0 %v886
    %888 = vmatprep.subr.mxu0 0.0
    %889 = vmatpush1.msra.mxu0 0.0
    %890 = vmatprep.subr.mxu0 0.0
    %891 = vmatpush1.msra.mxu0 0.0
    %892 = vmatprep.subr.mxu0 0.0
    %893 = vmatpush1.msra.mxu0 0.0
    %894 = vmatprep.subr.mxu0 0.0
    %895 = vmatpush1.msra.mxu0 0.0
    %896 = vmatprep.subr.mxu0 0.0
    %897 = vmatpush1.msra.mxu0 0.0
    %898 = vmatprep.subr.mxu0 0.0
    %899 = vmatpush1.msra.mxu0 0.0
    %900 = vmatprep.subr.mxu0 0.0
    %901 = vmatpush1.msra.mxu0 0.0
    %902 = vmatprep.subr.mxu0 0.0
    %903 = vmatpush1.msra.mxu0 0.0
    %904 = vmatprep.subr.mxu0 0.0
    %905 = vmatpush1.msra.mxu0 0.0
    %906 = vmatprep.subr.mxu0 0.0
    %907 = vmatpush1.msra.mxu0 0.0
    %908 = vmatprep.subr.mxu0 0.0
    %909 = vmatpush1.msra.mxu0 0.0
    %910 = vmatprep.subr.mxu0 0.0
    %911 = vmatpush1.msra.mxu0 0.0
    %912 = vmatprep.subr.mxu0 0.0
    %913 = vmatpush1.msra.mxu0 0.0
    %914 = vmatprep.subr.mxu0 0.0
    %915 = vmatpush1.msra.mxu0 0.0
    %916 = vmatprep.subr.mxu0 0.0
    %917 = vmatpush1.msra.mxu0 0.0
    %918 = vmatprep.subr.mxu0 0.0
    %919 = vmatpush1.msra.mxu0 0.0
    %920 = vmatprep.mubr.f32.mxu0 0.0
    %v921 = vand.u32 %v303, 4294901760
    %v922 = vsub.f32 %v303, %v921
    %923 = vmatmul.mubr.f32.gmra.mrb[0].mxu0 %v922
    %v924 = vpop.f32.mrb[0].mxu0
    %v925 = vadd.f32 %v731, %v924
    %v926 = vpop.f32.mrb[0].mxu0
    %927 = vmatprep.mubr.f32.mxu0 0.0
    %v928 = vand.u32 %v304, 4294901760
    %v929 = vsub.f32 %v304, %v928
    %930 = vmatmul.mubr.f32.gmra.mrb[0].mxu0 %v929
    %v931 = vpop.f32.mrb[0].mxu0
    %v932 = vadd.f32 %v737, %v931
    %v933 = vpop.f32.mrb[0].mxu0
    %934 = vmatprep.mubr.f32.mxu0 0.0
    %v935 = vand.u32 %v305, 4294901760
    %v936 = vsub.f32 %v305, %v935
    %937 = vmatmul.mubr.f32.gmra.mrb[0].mxu0 %v936
    %v938 = vpop.f32.mrb[0].mxu0
    %v939 = vadd.f32 %v743, %v938
    %v940 = vpop.f32.mrb[0].mxu0
    %941 = vmatprep.mubr.f32.mxu0 0.0
    %v942 = vand.u32 %v306, 4294901760
    %v943 = vsub.f32 %v306, %v942
    %944 = vmatmul.mubr.f32.gmra.mrb[0].mxu0 %v943
    %v945 = vpop.f32.mrb[0].mxu0
    %v946 = vadd.f32 %v749, %v945
    %v947 = vpop.f32.mrb[0].mxu0
    %948 = vmatprep.mubr.f32.mxu0 0.0
    %v949 = vand.u32 %v307, 4294901760
    %v950 = vsub.f32 %v307, %v949
    %951 = vmatmul.mubr.f32.gmra.mrb[0].mxu0 %v950
    %v952 = vpop.f32.mrb[0].mxu0
    %v953 = vadd.f32 %v755, %v952
    %v954 = vpop.f32.mrb[0].mxu0
    %955 = vmatprep.mubr.f32.mxu0 0.0
    %v956 = vand.u32 %v308, 4294901760
    %v957 = vsub.f32 %v308, %v956
    %958 = vmatmul.mubr.f32.gmra.mrb[0].mxu0 %v957
    %v959 = vpop.f32.mrb[0].mxu0
    %v960 = vadd.f32 %v761, %v959
    %v961 = vpop.f32.mrb[0].mxu0
    %962 = vmatprep.mubr.f32.mxu0 0.0
    %v963 = vand.u32 %v309, 4294901760
    %v964 = vsub.f32 %v309, %v963
    %965 = vmatmul.mubr.f32.gmra.mrb[0].mxu0 %v964
    %v966 = vpop.f32.mrb[0].mxu0
    %v967 = vadd.f32 %v767, %v966
    %v968 = vpop.f32.mrb[0].mxu0
    %969 = vmatprep.mubr.f32.mxu0 0.0
    %v970 = vand.u32 %v310, 4294901760
    %v971 = vsub.f32 %v310, %v970
    %972 = vmatmul.mubr.f32.gmra.mrb[0].mxu0 %v971
    %v973 = vpop.f32.mrb[0].mxu0
    %v974 = vadd.f32 %v773, %v973
    %v975 = vpop.f32.mrb[0].mxu0
    %976 = vmatprep.mubr.f32.mxu0 0.0
    %v977 = vand.u32 %v311, 4294901760
    %v978 = vsub.f32 %v311, %v977
    %979 = vmatmul.mubr.f32.gmra.mrb[0].mxu0 %v978
    %v980 = vpop.f32.mrb[0].mxu0
    %v981 = vadd.f32 %v779, %v980
    %v982 = vpop.f32.mrb[0].mxu0
    %983 = vmatprep.mubr.f32.mxu0 0.0
    %v984 = vand.u32 %v312, 4294901760
    %v985 = vsub.f32 %v312, %v984
    %986 = vmatmul.mubr.f32.gmra.mrb[0].mxu0 %v985
    %v987 = vpop.f32.mrb[0].mxu0
    %v988 = vadd.f32 %v785, %v987
    %v989 = vpop.f32.mrb[0].mxu0
    %990 = vmatprep.mubr.f32.mxu0 0.0
    %v991 = vand.u32 %v313, 4294901760
    %v992 = vsub.f32 %v313, %v991
    %993 = vmatmul.mubr.f32.gmra.mrb[0].mxu0 %v992
    %v994 = vpop.f32.mrb[0].mxu0
    %v995 = vadd.f32 %v791, %v994
    %v996 = vpop.f32.mrb[0].mxu0
    %997 = vmatprep.mubr.f32.mxu0 0.0
    %v998 = vand.u32 %v314, 4294901760
    %v999 = vsub.f32 %v314, %v998
    %1000 = vmatmul.mubr.f32.gmra.mrb[0].mxu0 %v999
    %v1001 = vpop.f32.mrb[0].mxu0
    %v1002 = vadd.f32 %v797, %v1001
    %v1003 = vpop.f32.mrb[0].mxu0
    %1004 = vmatprep.mubr.f32.mxu0 0.0
    %v1005 = vand.u32 %v315, 4294901760
    %v1006 = vsub.f32 %v315, %v1005
    %1007 = vmatmul.mubr.f32.gmra.mrb[0].mxu0 %v1006
    %v1008 = vpop.f32.mrb[0].mxu0
    %v1009 = vadd.f32 %v803, %v1008
    %v1010 = vpop.f32.mrb[0].mxu0
    %1011 = vmatprep.mubr.f32.mxu0 0.0
    %v1012 = vand.u32 %v316, 4294901760
    %v1013 = vsub.f32 %v316, %v1012
    %1014 = vmatmul.mubr.f32.gmra.mrb[0].mxu0 %v1013
    %v1015 = vpop.f32.mrb[0].mxu0
    %v1016 = vadd.f32 %v809, %v1015
    %v1017 = vpop.f32.mrb[0].mxu0
    %1018 = vmatprep.mubr.f32.mxu0 0.0
    %v1019 = vand.u32 %v317, 4294901760
    %v1020 = vsub.f32 %v317, %v1019
    %1021 = vmatmul.mubr.f32.gmra.mrb[0].mxu0 %v1020
    %v1022 = vpop.f32.mrb[0].mxu0
    %v1023 = vadd.f32 %v815, %v1022
    %v1024 = vpop.f32.mrb[0].mxu0
    %1025 = vmatprep.mubr.f32.mxu0 0.0
    %v1026 = vand.u32 %v318, 4294901760
    %v1027 = vsub.f32 %v318, %v1026
    %1028 = vmatmul.mubr.f32.gmra.mrb[0].mxu0 %v1027
    %v1029 = vpop.f32.mrb[0].mxu0
    %v1030 = vadd.f32 %v821, %v1029
    %v1031 = vpop.f32.mrb[0].mxu0
    %1032 = vdwg.mxu0
    %1033 = vmatprep.subr.mxu0 0.0
    %v1034 = vand.u32 %v319, 4294901760
    %1035 = vmatpush1.msra.mxu0 %v1034
    %1036 = vmatprep.subr.mxu0 0.0
    %v1037 = vand.u32 %v320, 4294901760
    %1038 = vmatpush1.msra.mxu0 %v1037
    %1039 = vmatprep.subr.mxu0 0.0
    %v1040 = vand.u32 %v321, 4294901760
    %1041 = vmatpush1.msra.mxu0 %v1040
    %1042 = vmatprep.subr.mxu0 0.0
    %v1043 = vand.u32 %v322, 4294901760
    %1044 = vmatpush1.msra.mxu0 %v1043
    %1045 = vmatprep.subr.mxu0 0.0
    %v1046 = vand.u32 %v323, 4294901760
    %1047 = vmatpush1.msra.mxu0 %v1046
    %1048 = vmatprep.subr.mxu0 0.0
    %v1049 = vand.u32 %v324, 4294901760
    %1050 = vmatpush1.msra.mxu0 %v1049
    %1051 = vmatprep.subr.mxu0 0.0
    %v1052 = vand.u32 %v325, 4294901760
    %1053 = vmatpush1.msra.mxu0 %v1052
    %1054 = vmatprep.subr.mxu0 0.0
    %v1055 = vand.u32 %v326, 4294901760
    %1056 = vmatpush1.msra.mxu0 %v1055
    %1057 = vmatprep.subr.mxu0 0.0
    %v1058 = vand.u32 %v327, 4294901760
    %1059 = vmatpush1.msra.mxu0 %v1058
    %1060 = vmatprep.subr.mxu0 0.0
    %v1061 = vand.u32 %v328, 4294901760
    %1062 = vmatpush1.msra.mxu0 %v1061
    %1063 = vmatprep.subr.mxu0 0.0
    %v1064 = vand.u32 %v329, 4294901760
    %1065 = vmatpush1.msra.mxu0 %v1064
    %1066 = vmatprep.subr.mxu0 0.0
    %v1067 = vand.u32 %v330, 4294901760
    %1068 = vmatpush1.msra.mxu0 %v1067
    %1069 = vmatprep.subr.mxu0 0.0
    %v1070 = vand.u32 %v331, 4294901760
    %1071 = vmatpush1.msra.mxu0 %v1070
    %1072 = vmatprep.subr.mxu0 0.0
    %v1073 = vand.u32 %v332, 4294901760
    %1074 = vmatpush1.msra.mxu0 %v1073
    %1075 = vmatprep.subr.mxu0 0.0
    %v1076 = vand.u32 %v333, 4294901760
    %1077 = vmatpush1.msra.mxu0 %v1076
    %1078 = vmatprep.subr.mxu0 0.0
    %v1079 = vand.u32 %v334, 4294901760
    %1080 = vmatpush1.msra.mxu0 %v1079
    %1081 = vmatprep.subr.mxu0 0.0
    %1082 = vmatpush1.msra.mxu0 0.0
    %1083 = vmatprep.subr.mxu0 0.0
    %1084 = vmatpush1.msra.mxu0 0.0
    %1085 = vmatprep.subr.mxu0 0.0
    %1086 = vmatpush1.msra.mxu0 0.0
    %1087 = vmatprep.subr.mxu0 0.0
    %1088 = vmatpush1.msra.mxu0 0.0
    %1089 = vmatprep.subr.mxu0 0.0
    %1090 = vmatpush1.msra.mxu0 0.0
    %1091 = vmatprep.subr.mxu0 0.0
    %1092 = vmatpush1.msra.mxu0 0.0
    %1093 = vmatprep.subr.mxu0 0.0
    %1094 = vmatpush1.msra.mxu0 0.0
    %1095 = vmatprep.subr.mxu0 0.0
    %1096 = vmatpush1.msra.mxu0 0.0
    %1097 = vmatprep.subr.mxu0 0.0
    %1098 = vmatpush1.msra.mxu0 0.0
    %1099 = vmatprep.subr.mxu0 0.0
    %1100 = vmatpush1.msra.mxu0 0.0
    %1101 = vmatprep.subr.mxu0 0.0
    %1102 = vmatpush1.msra.mxu0 0.0
    %1103 = vmatprep.subr.mxu0 0.0
    %1104 = vmatpush1.msra.mxu0 0.0
    %1105 = vmatprep.subr.mxu0 0.0
    %1106 = vmatpush1.msra.mxu0 0.0
    %1107 = vmatprep.subr.mxu0 0.0
    %1108 = vmatpush1.msra.mxu0 0.0
    %1109 = vmatprep.subr.mxu0 0.0
    %1110 = vmatpush1.msra.mxu0 0.0
    %1111 = vmatprep.subr.mxu0 0.0
    %1112 = vmatpush1.msra.mxu0 0.0
    %1113 = vmatprep.mubr.f32.mxu0 0.0
    %v1114 = vand.u32 %v303, 4294901760
    %v1115 = vsub.f32 %v303, %v1114
    %v1116 = vand.u32 %v1115, 4294901760
    %1117 = vmatmul.mubr.f32.gmra.mrb[0].mxu0 %v1116
    %v1118 = vpop.f32.mrb[0].mxu0
    %v1119 = vadd.f32 %v925, %v1118
    %v1120 = vpop.f32.mrb[0].mxu0
    %1121 = vmatprep.mubr.f32.mxu0 0.0
    %v1122 = vand.u32 %v304, 4294901760
    %v1123 = vsub.f32 %v304, %v1122
    %v1124 = vand.u32 %v1123, 4294901760
    %1125 = vmatmul.mubr.f32.gmra.mrb[0].mxu0 %v1124
    %v1126 = vpop.f32.mrb[0].mxu0
    %v1127 = vadd.f32 %v932, %v1126
    %v1128 = vpop.f32.mrb[0].mxu0
    %1129 = vmatprep.mubr.f32.mxu0 0.0
    %v1130 = vand.u32 %v305, 4294901760
    %v1131 = vsub.f32 %v305, %v1130
    %v1132 = vand.u32 %v1131, 4294901760
    %1133 = vmatmul.mubr.f32.gmra.mrb[0].mxu0 %v1132
    %v1134 = vpop.f32.mrb[0].mxu0
    %v1135 = vadd.f32 %v939, %v1134
    %v1136 = vpop.f32.mrb[0].mxu0
    %1137 = vmatprep.mubr.f32.mxu0 0.0
    %v1138 = vand.u32 %v306, 4294901760
    %v1139 = vsub.f32 %v306, %v1138
    %v1140 = vand.u32 %v1139, 4294901760
    %1141 = vmatmul.mubr.f32.gmra.mrb[0].mxu0 %v1140
    %v1142 = vpop.f32.mrb[0].mxu0
    %v1143 = vadd.f32 %v946, %v1142
    %v1144 = vpop.f32.mrb[0].mxu0
    %1145 = vmatprep.mubr.f32.mxu0 0.0
    %v1146 = vand.u32 %v307, 4294901760
    %v1147 = vsub.f32 %v307, %v1146
    %v1148 = vand.u32 %v1147, 4294901760
    %1149 = vmatmul.mubr.f32.gmra.mrb[0].mxu0 %v1148
    %v1150 = vpop.f32.mrb[0].mxu0
    %v1151 = vadd.f32 %v953, %v1150
    %v1152 = vpop.f32.mrb[0].mxu0
    %1153 = vmatprep.mubr.f32.mxu0 0.0
    %v1154 = vand.u32 %v308, 4294901760
    %v1155 = vsub.f32 %v308, %v1154
    %v1156 = vand.u32 %v1155, 4294901760
    %1157 = vmatmul.mubr.f32.gmra.mrb[0].mxu0 %v1156
    %v1158 = vpop.f32.mrb[0].mxu0
    %v1159 = vadd.f32 %v960, %v1158
    %v1160 = vpop.f32.mrb[0].mxu0
    %1161 = vmatprep.mubr.f32.mxu0 0.0
    %v1162 = vand.u32 %v309, 4294901760
    %v1163 = vsub.f32 %v309, %v1162
    %v1164 = vand.u32 %v1163, 4294901760
    %1165 = vmatmul.mubr.f32.gmra.mrb[0].mxu0 %v1164
    %v1166 = vpop.f32.mrb[0].mxu0
    %v1167 = vadd.f32 %v967, %v1166
    %v1168 = vpop.f32.mrb[0].mxu0
    %1169 = vmatprep.mubr.f32.mxu0 0.0
    %v1170 = vand.u32 %v310, 4294901760
    %v1171 = vsub.f32 %v310, %v1170
    %v1172 = vand.u32 %v1171, 4294901760
    %1173 = vmatmul.mubr.f32.gmra.mrb[0].mxu0 %v1172
    %v1174 = vpop.f32.mrb[0].mxu0
    %v1175 = vadd.f32 %v974, %v1174
    %v1176 = vpop.f32.mrb[0].mxu0
    %1177 = vmatprep.mubr.f32.mxu0 0.0
    %v1178 = vand.u32 %v311, 4294901760
    %v1179 = vsub.f32 %v311, %v1178
    %v1180 = vand.u32 %v1179, 4294901760
    %1181 = vmatmul.mubr.f32.gmra.mrb[0].mxu0 %v1180
    %v1182 = vpop.f32.mrb[0].mxu0
    %v1183 = vadd.f32 %v981, %v1182
    %v1184 = vpop.f32.mrb[0].mxu0
    %1185 = vmatprep.mubr.f32.mxu0 0.0
    %v1186 = vand.u32 %v312, 4294901760
    %v1187 = vsub.f32 %v312, %v1186
    %v1188 = vand.u32 %v1187, 4294901760
    %1189 = vmatmul.mubr.f32.gmra.mrb[0].mxu0 %v1188
    %v1190 = vpop.f32.mrb[0].mxu0
    %v1191 = vadd.f32 %v988, %v1190
    %v1192 = vpop.f32.mrb[0].mxu0
    %1193 = vmatprep.mubr.f32.mxu0 0.0
    %v1194 = vand.u32 %v313, 4294901760
    %v1195 = vsub.f32 %v313, %v1194
    %v1196 = vand.u32 %v1195, 4294901760
    %1197 = vmatmul.mubr.f32.gmra.mrb[0].mxu0 %v1196
    %v1198 = vpop.f32.mrb[0].mxu0
    %v1199 = vadd.f32 %v995, %v1198
    %v1200 = vpop.f32.mrb[0].mxu0
    %1201 = vmatprep.mubr.f32.mxu0 0.0
    %v1202 = vand.u32 %v314, 4294901760
    %v1203 = vsub.f32 %v314, %v1202
    %v1204 = vand.u32 %v1203, 4294901760
    %1205 = vmatmul.mubr.f32.gmra.mrb[0].mxu0 %v1204
    %v1206 = vpop.f32.mrb[0].mxu0
    %v1207 = vadd.f32 %v1002, %v1206
    %v1208 = vpop.f32.mrb[0].mxu0
    %1209 = vmatprep.mubr.f32.mxu0 0.0
    %v1210 = vand.u32 %v315, 4294901760
    %v1211 = vsub.f32 %v315, %v1210
    %v1212 = vand.u32 %v1211, 4294901760
    %1213 = vmatmul.mubr.f32.gmra.mrb[0].mxu0 %v1212
    %v1214 = vpop.f32.mrb[0].mxu0
    %v1215 = vadd.f32 %v1009, %v1214
    %v1216 = vpop.f32.mrb[0].mxu0
    %1217 = vmatprep.mubr.f32.mxu0 0.0
    %v1218 = vand.u32 %v316, 4294901760
    %v1219 = vsub.f32 %v316, %v1218
    %v1220 = vand.u32 %v1219, 4294901760
    %1221 = vmatmul.mubr.f32.gmra.mrb[0].mxu0 %v1220
    %v1222 = vpop.f32.mrb[0].mxu0
    %v1223 = vadd.f32 %v1016, %v1222
    %v1224 = vpop.f32.mrb[0].mxu0
    %1225 = vmatprep.mubr.f32.mxu0 0.0
    %v1226 = vand.u32 %v317, 4294901760
    %v1227 = vsub.f32 %v317, %v1226
    %v1228 = vand.u32 %v1227, 4294901760
    %1229 = vmatmul.mubr.f32.gmra.mrb[0].mxu0 %v1228
    %v1230 = vpop.f32.mrb[0].mxu0
    %v1231 = vadd.f32 %v1023, %v1230
    %v1232 = vpop.f32.mrb[0].mxu0
    %1233 = vmatprep.mubr.f32.mxu0 0.0
    %v1234 = vand.u32 %v318, 4294901760
    %v1235 = vsub.f32 %v318, %v1234
    %v1236 = vand.u32 %v1235, 4294901760
    %1237 = vmatmul.mubr.f32.gmra.mrb[0].mxu0 %v1236
    %v1238 = vpop.f32.mrb[0].mxu0
    %v1239 = vadd.f32 %v1030, %v1238
    %v1240 = vpop.f32.mrb[0].mxu0
    %1241 = vdwg.mxu0
    %1242 = vmatprep.subr.mxu0 0.0
    %v1243 = vand.u32 %v319, 4294901760
    %v1244 = vsub.f32 %v319, %v1243
    %v1245 = vand.u32 %v1244, 4294901760
    %1246 = vmatpush1.msra.mxu0 %v1245
    %1247 = vmatprep.subr.mxu0 0.0
    %v1248 = vand.u32 %v320, 4294901760
    %v1249 = vsub.f32 %v320, %v1248
    %v1250 = vand.u32 %v1249, 4294901760
    %1251 = vmatpush1.msra.mxu0 %v1250
    %1252 = vmatprep.subr.mxu0 0.0
    %v1253 = vand.u32 %v321, 4294901760
    %v1254 = vsub.f32 %v321, %v1253
    %v1255 = vand.u32 %v1254, 4294901760
    %1256 = vmatpush1.msra.mxu0 %v1255
    %1257 = vmatprep.subr.mxu0 0.0
    %v1258 = vand.u32 %v322, 4294901760
    %v1259 = vsub.f32 %v322, %v1258
    %v1260 = vand.u32 %v1259, 4294901760
    %1261 = vmatpush1.msra.mxu0 %v1260
    %1262 = vmatprep.subr.mxu0 0.0
    %v1263 = vand.u32 %v323, 4294901760
    %v1264 = vsub.f32 %v323, %v1263
    %v1265 = vand.u32 %v1264, 4294901760
    %1266 = vmatpush1.msra.mxu0 %v1265
    %1267 = vmatprep.subr.mxu0 0.0
    %v1268 = vand.u32 %v324, 4294901760
    %v1269 = vsub.f32 %v324, %v1268
    %v1270 = vand.u32 %v1269, 4294901760
    %1271 = vmatpush1.msra.mxu0 %v1270
    %1272 = vmatprep.subr.mxu0 0.0
    %v1273 = vand.u32 %v325, 4294901760
    %v1274 = vsub.f32 %v325, %v1273
    %v1275 = vand.u32 %v1274, 4294901760
    %1276 = vmatpush1.msra.mxu0 %v1275
    %1277 = vmatprep.subr.mxu0 0.0
    %v1278 = vand.u32 %v326, 4294901760
    %v1279 = vsub.f32 %v326, %v1278
    %v1280 = vand.u32 %v1279, 4294901760
    %1281 = vmatpush1.msra.mxu0 %v1280
    %1282 = vmatprep.subr.mxu0 0.0
    %v1283 = vand.u32 %v327, 4294901760
    %v1284 = vsub.f32 %v327, %v1283
    %v1285 = vand.u32 %v1284, 4294901760
    %1286 = vmatpush1.msra.mxu0 %v1285
    %1287 = vmatprep.subr.mxu0 0.0
    %v1288 = vand.u32 %v328, 4294901760
    %v1289 = vsub.f32 %v328, %v1288
    %v1290 = vand.u32 %v1289, 4294901760
    %1291 = vmatpush1.msra.mxu0 %v1290
    %1292 = vmatprep.subr.mxu0 0.0
    %v1293 = vand.u32 %v329, 4294901760
    %v1294 = vsub.f32 %v329, %v1293
    %v1295 = vand.u32 %v1294, 4294901760
    %1296 = vmatpush1.msra.mxu0 %v1295
    %1297 = vmatprep.subr.mxu0 0.0
    %v1298 = vand.u32 %v330, 4294901760
    %v1299 = vsub.f32 %v330, %v1298
    %v1300 = vand.u32 %v1299, 4294901760
    %1301 = vmatpush1.msra.mxu0 %v1300
    %1302 = vmatprep.subr.mxu0 0.0
    %v1303 = vand.u32 %v331, 4294901760
    %v1304 = vsub.f32 %v331, %v1303
    %v1305 = vand.u32 %v1304, 4294901760
    %1306 = vmatpush1.msra.mxu0 %v1305
    %1307 = vmatprep.subr.mxu0 0.0
    %v1308 = vand.u32 %v332, 4294901760
    %v1309 = vsub.f32 %v332, %v1308
    %v1310 = vand.u32 %v1309, 4294901760
    %1311 = vmatpush1.msra.mxu0 %v1310
    %1312 = vmatprep.subr.mxu0 0.0
    %v1313 = vand.u32 %v333, 4294901760
    %v1314 = vsub.f32 %v333, %v1313
    %v1315 = vand.u32 %v1314, 4294901760
    %1316 = vmatpush1.msra.mxu0 %v1315
    %1317 = vmatprep.subr.mxu0 0.0
    %v1318 = vand.u32 %v334, 4294901760
    %v1319 = vsub.f32 %v334, %v1318
    %v1320 = vand.u32 %v1319, 4294901760
    %1321 = vmatpush1.msra.mxu0 %v1320
    %1322 = vmatprep.subr.mxu0 0.0
    %1323 = vmatpush1.msra.mxu0 0.0
    %1324 = vmatprep.subr.mxu0 0.0
    %1325 = vmatpush1.msra.mxu0 0.0
    %1326 = vmatprep.subr.mxu0 0.0
    %1327 = vmatpush1.msra.mxu0 0.0
    %1328 = vmatprep.subr.mxu0 0.0
    %1329 = vmatpush1.msra.mxu0 0.0
    %1330 = vmatprep.subr.mxu0 0.0
    %1331 = vmatpush1.msra.mxu0 0.0
    %1332 = vmatprep.subr.mxu0 0.0
    %1333 = vmatpush1.msra.mxu0 0.0
    %1334 = vmatprep.subr.mxu0 0.0
    %1335 = vmatpush1.msra.mxu0 0.0
    %1336 = vmatprep.subr.mxu0 0.0
    %1337 = vmatpush1.msra.mxu0 0.0
    %1338 = vmatprep.subr.mxu0 0.0
    %1339 = vmatpush1.msra.mxu0 0.0
    %1340 = vmatprep.subr.mxu0 0.0
    %1341 = vmatpush1.msra.mxu0 0.0
    %1342 = vmatprep.subr.mxu0 0.0
    %1343 = vmatpush1.msra.mxu0 0.0
    %1344 = vmatprep.subr.mxu0 0.0
    %1345 = vmatpush1.msra.mxu0 0.0
    %1346 = vmatprep.subr.mxu0 0.0
    %1347 = vmatpush1.msra.mxu0 0.0
    %1348 = vmatprep.subr.mxu0 0.0
    %1349 = vmatpush1.msra.mxu0 0.0
    %1350 = vmatprep.subr.mxu0 0.0
    %1351 = vmatpush1.msra.mxu0 0.0
    %1352 = vmatprep.subr.mxu0 0.0
    %1353 = vmatpush1.msra.mxu0 0.0
    %1354 = vmatprep.mubr.f32.mxu0 0.0
    %v1355 = vand.u32 %v303, 4294901760
    %1356 = vmatmul.mubr.f32.gmra.mrb[0].mxu0 %v1355
    %v1357 = vpop.f32.mrb[0].mxu0
    %v1358 = vadd.f32 %v1119, %v1357
    %v1359 = vpop.f32.mrb[0].mxu0
    %1360 = vmatprep.mubr.f32.mxu0 0.0
    %v1361 = vand.u32 %v304, 4294901760
    %1362 = vmatmul.mubr.f32.gmra.mrb[0].mxu0 %v1361
    %v1363 = vpop.f32.mrb[0].mxu0
    %v1364 = vadd.f32 %v1127, %v1363
    %v1365 = vpop.f32.mrb[0].mxu0
    %1366 = vmatprep.mubr.f32.mxu0 0.0
    %v1367 = vand.u32 %v305, 4294901760
    %1368 = vmatmul.mubr.f32.gmra.mrb[0].mxu0 %v1367
    %v1369 = vpop.f32.mrb[0].mxu0
    %v1370 = vadd.f32 %v1135, %v1369
    %v1371 = vpop.f32.mrb[0].mxu0
    %1372 = vmatprep.mubr.f32.mxu0 0.0
    %v1373 = vand.u32 %v306, 4294901760
    %1374 = vmatmul.mubr.f32.gmra.mrb[0].mxu0 %v1373
    %v1375 = vpop.f32.mrb[0].mxu0
    %v1376 = vadd.f32 %v1143, %v1375
    %v1377 = vpop.f32.mrb[0].mxu0
    %1378 = vmatprep.mubr.f32.mxu0 0.0
    %v1379 = vand.u32 %v307, 4294901760
    %1380 = vmatmul.mubr.f32.gmra.mrb[0].mxu0 %v1379
    %v1381 = vpop.f32.mrb[0].mxu0
    %v1382 = vadd.f32 %v1151, %v1381
    %v1383 = vpop.f32.mrb[0].mxu0
    %1384 = vmatprep.mubr.f32.mxu0 0.0
    %v1385 = vand.u32 %v308, 4294901760
    %1386 = vmatmul.mubr.f32.gmra.mrb[0].mxu0 %v1385
    %v1387 = vpop.f32.mrb[0].mxu0
    %v1388 = vadd.f32 %v1159, %v1387
    %v1389 = vpop.f32.mrb[0].mxu0
    %1390 = vmatprep.mubr.f32.mxu0 0.0
    %v1391 = vand.u32 %v309, 4294901760
    %1392 = vmatmul.mubr.f32.gmra.mrb[0].mxu0 %v1391
    %v1393 = vpop.f32.mrb[0].mxu0
    %v1394 = vadd.f32 %v1167, %v1393
    %v1395 = vpop.f32.mrb[0].mxu0
    %1396 = vmatprep.mubr.f32.mxu0 0.0
    %v1397 = vand.u32 %v310, 4294901760
    %1398 = vmatmul.mubr.f32.gmra.mrb[0].mxu0 %v1397
    %v1399 = vpop.f32.mrb[0].mxu0
    %v1400 = vadd.f32 %v1175, %v1399
    %v1401 = vpop.f32.mrb[0].mxu0
    %1402 = vmatprep.mubr.f32.mxu0 0.0
    %v1403 = vand.u32 %v311, 4294901760
    %1404 = vmatmul.mubr.f32.gmra.mrb[0].mxu0 %v1403
    %v1405 = vpop.f32.mrb[0].mxu0
    %v1406 = vadd.f32 %v1183, %v1405
    %v1407 = vpop.f32.mrb[0].mxu0
    %1408 = vmatprep.mubr.f32.mxu0 0.0
    %v1409 = vand.u32 %v312, 4294901760
    %1410 = vmatmul.mubr.f32.gmra.mrb[0].mxu0 %v1409
    %v1411 = vpop.f32.mrb[0].mxu0
    %v1412 = vadd.f32 %v1191, %v1411
    %v1413 = vpop.f32.mrb[0].mxu0
    %1414 = vmatprep.mubr.f32.mxu0 0.0
    %v1415 = vand.u32 %v313, 4294901760
    %1416 = vmatmul.mubr.f32.gmra.mrb[0].mxu0 %v1415
    %v1417 = vpop.f32.mrb[0].mxu0
    %v1418 = vadd.f32 %v1199, %v1417
    %v1419 = vpop.f32.mrb[0].mxu0
    %1420 = vmatprep.mubr.f32.mxu0 0.0
    %v1421 = vand.u32 %v314, 4294901760
    %1422 = vmatmul.mubr.f32.gmra.mrb[0].mxu0 %v1421
    %v1423 = vpop.f32.mrb[0].mxu0
    %v1424 = vadd.f32 %v1207, %v1423
    %v1425 = vpop.f32.mrb[0].mxu0
    %1426 = vmatprep.mubr.f32.mxu0 0.0
    %v1427 = vand.u32 %v315, 4294901760
    %1428 = vmatmul.mubr.f32.gmra.mrb[0].mxu0 %v1427
    %v1429 = vpop.f32.mrb[0].mxu0
    %v1430 = vadd.f32 %v1215, %v1429
    %v1431 = vpop.f32.mrb[0].mxu0
    %1432 = vmatprep.mubr.f32.mxu0 0.0
    %v1433 = vand.u32 %v316, 4294901760
    %1434 = vmatmul.mubr.f32.gmra.mrb[0].mxu0 %v1433
    %v1435 = vpop.f32.mrb[0].mxu0
    %v1436 = vadd.f32 %v1223, %v1435
    %v1437 = vpop.f32.mrb[0].mxu0
    %1438 = vmatprep.mubr.f32.mxu0 0.0
    %v1439 = vand.u32 %v317, 4294901760
    %1440 = vmatmul.mubr.f32.gmra.mrb[0].mxu0 %v1439
    %v1441 = vpop.f32.mrb[0].mxu0
    %v1442 = vadd.f32 %v1231, %v1441
    %v1443 = vpop.f32.mrb[0].mxu0
    %1444 = vmatprep.mubr.f32.mxu0 0.0
    %v1445 = vand.u32 %v318, 4294901760
    %1446 = vmatmul.mubr.f32.gmra.mrb[0].mxu0 %v1445
    %v1447 = vpop.f32.mrb[0].mxu0
    %v1448 = vadd.f32 %v1239, %v1447
    %v1449 = vpop.f32.mrb[0].mxu0
    %1450 = vdwg.mxu0
    %1451 = vmatprep.subr.mxu0 0.0
    %v1452 = vand.u32 %v319, 4294901760
    %1453 = vmatpush1.msra.mxu0 %v1452
    %1454 = vmatprep.subr.mxu0 0.0
    %v1455 = vand.u32 %v320, 4294901760
    %1456 = vmatpush1.msra.mxu0 %v1455
    %1457 = vmatprep.subr.mxu0 0.0
    %v1458 = vand.u32 %v321, 4294901760
    %1459 = vmatpush1.msra.mxu0 %v1458
    %1460 = vmatprep.subr.mxu0 0.0
    %v1461 = vand.u32 %v322, 4294901760
    %1462 = vmatpush1.msra.mxu0 %v1461
    %1463 = vmatprep.subr.mxu0 0.0
    %v1464 = vand.u32 %v323, 4294901760
    %1465 = vmatpush1.msra.mxu0 %v1464
    %1466 = vmatprep.subr.mxu0 0.0
    %v1467 = vand.u32 %v324, 4294901760
    %1468 = vmatpush1.msra.mxu0 %v1467
    %1469 = vmatprep.subr.mxu0 0.0
    %v1470 = vand.u32 %v325, 4294901760
    %1471 = vmatpush1.msra.mxu0 %v1470
    %1472 = vmatprep.subr.mxu0 0.0
    %v1473 = vand.u32 %v326, 4294901760
    %1474 = vmatpush1.msra.mxu0 %v1473
    %1475 = vmatprep.subr.mxu0 0.0
    %v1476 = vand.u32 %v327, 4294901760
    %1477 = vmatpush1.msra.mxu0 %v1476
    %1478 = vmatprep.subr.mxu0 0.0
    %v1479 = vand.u32 %v328, 4294901760
    %1480 = vmatpush1.msra.mxu0 %v1479
    %1481 = vmatprep.subr.mxu0 0.0
    %v1482 = vand.u32 %v329, 4294901760
    %1483 = vmatpush1.msra.mxu0 %v1482
    %1484 = vmatprep.subr.mxu0 0.0
    %v1485 = vand.u32 %v330, 4294901760
    %1486 = vmatpush1.msra.mxu0 %v1485
    %1487 = vmatprep.subr.mxu0 0.0
    %v1488 = vand.u32 %v331, 4294901760
    %1489 = vmatpush1.msra.mxu0 %v1488
    %1490 = vmatprep.subr.mxu0 0.0
    %v1491 = vand.u32 %v332, 4294901760
    %1492 = vmatpush1.msra.mxu0 %v1491
    %1493 = vmatprep.subr.mxu0 0.0
    %v1494 = vand.u32 %v333, 4294901760
    %1495 = vmatpush1.msra.mxu0 %v1494
    %1496 = vmatprep.subr.mxu0 0.0
    %v1497 = vand.u32 %v334, 4294901760
    %1498 = vmatpush1.msra.mxu0 %v1497
    %1499 = vmatprep.subr.mxu0 0.0
    %1500 = vmatpush1.msra.mxu0 0.0
    %1501 = vmatprep.subr.mxu0 0.0
    %1502 = vmatpush1.msra.mxu0 0.0
    %1503 = vmatprep.subr.mxu0 0.0
    %1504 = vmatpush1.msra.mxu0 0.0
    %1505 = vmatprep.subr.mxu0 0.0
    %1506 = vmatpush1.msra.mxu0 0.0
    %1507 = vmatprep.subr.mxu0 0.0
    %1508 = vmatpush1.msra.mxu0 0.0
    %1509 = vmatprep.subr.mxu0 0.0
    %1510 = vmatpush1.msra.mxu0 0.0
    %1511 = vmatprep.subr.mxu0 0.0
    %1512 = vmatpush1.msra.mxu0 0.0
    %1513 = vmatprep.subr.mxu0 0.0
    %1514 = vmatpush1.msra.mxu0 0.0
    %1515 = vmatprep.subr.mxu0 0.0
    %1516 = vmatpush1.msra.mxu0 0.0
    %1517 = vmatprep.subr.mxu0 0.0
    %1518 = vmatpush1.msra.mxu0 0.0
    %1519 = vmatprep.subr.mxu0 0.0
    %1520 = vmatpush1.msra.mxu0 0.0
    %1521 = vmatprep.subr.mxu0 0.0
    %1522 = vmatpush1.msra.mxu0 0.0
    %1523 = vmatprep.subr.mxu0 0.0
    %1524 = vmatpush1.msra.mxu0 0.0
    %1525 = vmatprep.subr.mxu0 0.0
    %1526 = vmatpush1.msra.mxu0 0.0
    %1527 = vmatprep.subr.mxu0 0.0
    %1528 = vmatpush1.msra.mxu0 0.0
    %1529 = vmatprep.subr.mxu0 0.0
    %1530 = vmatpush1.msra.mxu0 0.0
    %1531 = vmatprep.mubr.f32.mxu0 0.0
    %v1532 = vand.u32 %v303, 4294901760
    %1533 = vmatmul.mubr.f32.gmra.mrb[0].mxu0 %v1532
    %v1534 = vpop.f32.mrb[0].mxu0
    %v1535 = vadd.f32 %v1358, %v1534
    %v1536 = vpop.f32.mrb[0].mxu0
    %1537 = vmatprep.mubr.f32.mxu0 0.0
    %v1538 = vand.u32 %v304, 4294901760
    %1539 = vmatmul.mubr.f32.gmra.mrb[0].mxu0 %v1538
    %v1540 = vpop.f32.mrb[0].mxu0
    %v1541 = vadd.f32 %v1364, %v1540
    %v1542 = vpop.f32.mrb[0].mxu0
    %1543 = vmatprep.mubr.f32.mxu0 0.0
    %v1544 = vand.u32 %v305, 4294901760
    %1545 = vmatmul.mubr.f32.gmra.mrb[0].mxu0 %v1544
    %v1546 = vpop.f32.mrb[0].mxu0
    %v1547 = vadd.f32 %v1370, %v1546
    %v1548 = vpop.f32.mrb[0].mxu0
    %1549 = vmatprep.mubr.f32.mxu0 0.0
    %v1550 = vand.u32 %v306, 4294901760
    %1551 = vmatmul.mubr.f32.gmra.mrb[0].mxu0 %v1550
    %v1552 = vpop.f32.mrb[0].mxu0
    %v1553 = vadd.f32 %v1376, %v1552
    %v1554 = vpop.f32.mrb[0].mxu0
    %1555 = vmatprep.mubr.f32.mxu0 0.0
    %v1556 = vand.u32 %v307, 4294901760
    %1557 = vmatmul.mubr.f32.gmra.mrb[0].mxu0 %v1556
    %v1558 = vpop.f32.mrb[0].mxu0
    %v1559 = vadd.f32 %v1382, %v1558
    %v1560 = vpop.f32.mrb[0].mxu0
    %1561 = vmatprep.mubr.f32.mxu0 0.0
    %v1562 = vand.u32 %v308, 4294901760
    %1563 = vmatmul.mubr.f32.gmra.mrb[0].mxu0 %v1562
    %v1564 = vpop.f32.mrb[0].mxu0
    %v1565 = vadd.f32 %v1388, %v1564
    %v1566 = vpop.f32.mrb[0].mxu0
    %1567 = vmatprep.mubr.f32.mxu0 0.0
    %v1568 = vand.u32 %v309, 4294901760
    %1569 = vmatmul.mubr.f32.gmra.mrb[0].mxu0 %v1568
    %v1570 = vpop.f32.mrb[0].mxu0
    %v1571 = vadd.f32 %v1394, %v1570
    %v1572 = vpop.f32.mrb[0].mxu0
    %1573 = vmatprep.mubr.f32.mxu0 0.0
    %v1574 = vand.u32 %v310, 4294901760
    %1575 = vmatmul.mubr.f32.gmra.mrb[0].mxu0 %v1574
    %v1576 = vpop.f32.mrb[0].mxu0
    %v1577 = vadd.f32 %v1400, %v1576
    %v1578 = vpop.f32.mrb[0].mxu0
    %1579 = vmatprep.mubr.f32.mxu0 0.0
    %v1580 = vand.u32 %v311, 4294901760
    %1581 = vmatmul.mubr.f32.gmra.mrb[0].mxu0 %v1580
    %v1582 = vpop.f32.mrb[0].mxu0
    %v1583 = vadd.f32 %v1406, %v1582
    %v1584 = vpop.f32.mrb[0].mxu0
    %1585 = vmatprep.mubr.f32.mxu0 0.0
    %v1586 = vand.u32 %v312, 4294901760
    %1587 = vmatmul.mubr.f32.gmra.mrb[0].mxu0 %v1586
    %v1588 = vpop.f32.mrb[0].mxu0
    %v1589 = vadd.f32 %v1412, %v1588
    %v1590 = vpop.f32.mrb[0].mxu0
    %1591 = vmatprep.mubr.f32.mxu0 0.0
    %v1592 = vand.u32 %v313, 4294901760
    %1593 = vmatmul.mubr.f32.gmra.mrb[0].mxu0 %v1592
    %v1594 = vpop.f32.mrb[0].mxu0
    %v1595 = vadd.f32 %v1418, %v1594
    %v1596 = vpop.f32.mrb[0].mxu0
    %1597 = vmatprep.mubr.f32.mxu0 0.0
    %v1598 = vand.u32 %v314, 4294901760
    %1599 = vmatmul.mubr.f32.gmra.mrb[0].mxu0 %v1598
    %v1600 = vpop.f32.mrb[0].mxu0
    %v1601 = vadd.f32 %v1424, %v1600
    %v1602 = vpop.f32.mrb[0].mxu0
    %1603 = vmatprep.mubr.f32.mxu0 0.0
    %v1604 = vand.u32 %v315, 4294901760
    %1605 = vmatmul.mubr.f32.gmra.mrb[0].mxu0 %v1604
    %v1606 = vpop.f32.mrb[0].mxu0
    %v1607 = vadd.f32 %v1430, %v1606
    %v1608 = vpop.f32.mrb[0].mxu0
    %1609 = vmatprep.mubr.f32.mxu0 0.0
    %v1610 = vand.u32 %v316, 4294901760
    %1611 = vmatmul.mubr.f32.gmra.mrb[0].mxu0 %v1610
    %v1612 = vpop.f32.mrb[0].mxu0
    %v1613 = vadd.f32 %v1436, %v1612
    %v1614 = vpop.f32.mrb[0].mxu0
    %1615 = vmatprep.mubr.f32.mxu0 0.0
    %v1616 = vand.u32 %v317, 4294901760
    %1617 = vmatmul.mubr.f32.gmra.mrb[0].mxu0 %v1616
    %v1618 = vpop.f32.mrb[0].mxu0
    %v1619 = vadd.f32 %v1442, %v1618
    %v1620 = vpop.f32.mrb[0].mxu0
    %1621 = vmatprep.mubr.f32.mxu0 0.0
    %v1622 = vand.u32 %v318, 4294901760
    %1623 = vmatmul.mubr.f32.gmra.mrb[0].mxu0 %v1622
    %v1624 = vpop.f32.mrb[0].mxu0
    %v1625 = vadd.f32 %v1448, %v1624
    %v1626 = vpop.f32.mrb[0].mxu0
    %1627 = vdwg.mxu0
    %1628 = vst [vmem:[#allocation7] sm:$0xff] %v1535
    %1629 = vst [vmem:[#allocation7 + $0x8] sm:$0xff] %v1541
    %1630 = vst [vmem:[#allocation7 + $0x10] sm:$0xff] %v1547
    %1631 = vst [vmem:[#allocation7 + $0x18] sm:$0xff] %v1553
    %1632 = vst [vmem:[#allocation7 + $0x20] sm:$0xff] %v1559
    %1633 = vst [vmem:[#allocation7 + $0x28] sm:$0xff] %v1565
    %1634 = vst [vmem:[#allocation7 + $0x30] sm:$0xff] %v1571
    %1635 = vst [vmem:[#allocation7 + $0x38] sm:$0xff] %v1577
    %1636 = vst [vmem:[#allocation7 + $0x40] sm:$0xff] %v1583
    %1637 = vst [vmem:[#allocation7 + $0x48] sm:$0xff] %v1589
    %1638 = vst [vmem:[#allocation7 + $0x50] sm:$0xff] %v1595
    %1639 = vst [vmem:[#allocation7 + $0x58] sm:$0xff] %v1601
    %1640 = vst [vmem:[#allocation7 + $0x60] sm:$0xff] %v1607
    %1641 = vst [vmem:[#allocation7 + $0x68] sm:$0xff] %v1613
    %1642 = vst [vmem:[#allocation7 + $0x70] sm:$0xff] %v1619
    %1643 = vst [vmem:[#allocation7 + $0x78] sm:$0xff] %v1625
    // Predicated region
    $region30: #{tpu_custom_call.1} parent=1 // pred_check
      _
    $region31: #{tpu_custom_call.1} parent=1 // pred_check_branch
      %1645 = sbr.rel (0) target = $region33
    $region32: #{tpu_custom_call.1} parent=1 // pred_region
      %s1647 = ssub.s32 2048, 2048
      %1648 = vsyncadd [#allocation4], %s1647
      %s1649 = sshll.u32 [#allocation7], 4
      %s1650 = int_to_ptr.vmem [resolvable:$true] %s1649
      %1655 = dma.vmem_to_hbm [thread:$0]  %s1650, 2048, %s5, [#allocation4], 128, 128, 8
    $region33: #{tpu_custom_call.1} parent=1 // pred_fallthru
      _
    // Predicated region
    $region34: #{tpu_custom_call.1} parent=1 // pred_check
      _
    $region35: #{tpu_custom_call.1} parent=1 // pred_check_branch
      %1657 = sbr.rel (0) target = $region37
    $region36: #{tpu_custom_call.1} parent=1 // pred_region
      %1658 = dma.done [#allocation4], 2048
    $region37: #{tpu_custom_call.1} parent=1 // pred_fallthru
      _
    %1659 = vsyncpa [#allocation3], 1
    %1660 = vsyncpa [#allocation6], 1
    %1661 = vsyncpa [#allocation4], 1

</llo_original>
